<compile_context>
chip_gen: v5e
topology: v5e:2x2
jax: 0.10.0
libtpu: 0.0.40
codegen_flags: <defaults>
</compile_context>

<pallas_src>
import functools
import math

import jax
import jax.numpy as jnp
from jax.experimental import pallas as pl
from jax.experimental.pallas import tpu as pltpu


def _decoder_kernel(x_ref, enc_ref, wq1_ref, wq2_ref, seg_ref, segsum_ref,
                    exp_ref, cwo1_ref, cwo2_ref, w1t_ref, w2t_ref, consts_ref,
                    o_ref, *, D, H, HID, eps, compute_dtype):
    Dh = D // H
    HD = H * D
    HH = H * H
    cdt = compute_dtype

    x = x_ref[...].astype(jnp.float32)                     # [tm, D]

    consts = consts_ref[...]                               # [9, W] f32 (packed)
    mask_row = consts[0:1, :HH]                            # multiplicative mask
    bias1 = consts[1:2, :HID]                              # FFN bias 1
    bias2 = consts[2:3, :D]                                # FFN bias 2
    ln = consts[3:9, :D]                                   # g1,b1,g2,b2,g3,b3

    seg = seg_ref[...]                                     # [HD, HH] (x 1/sqrt(D))
    segsum = segsum_ref[...]                               # [HH, HH]
    expand = exp_ref[...]                                  # [HH, HD]

    def rep_heads(q):
        # [tm, D] -> [tm, H*D]: out[:, h*D + e*Dh + d] = q[:, h*Dh + d]
        # (head-h chunk replicated H times inside its D-wide group).  Built from
        # static lane slices + one concatenate: no H-inflated weights, no MXU.
        parts = [q[:, h * Dh:(h + 1) * Dh] for h in range(H)]
        return jnp.concatenate([parts[h] for h in range(H) for _ in range(H)],
                               axis=1)

    def tile_heads(k):
        # [tm, D] -> [tm, H*D]: whole D vector tiled H times along lanes.
        return jnp.concatenate([k] * H, axis=1)

    def layer_norm(y, g, b):
        mu = jnp.mean(y, axis=-1, keepdims=True)
        c = y - mu
        var = jnp.mean(c * c, axis=-1, keepdims=True)
        return c * jax.lax.rsqrt(var + eps) * g + b

    def attention(a, b, vt, cwo, mask):
        # Scores for all (head, head) pairs at once, lane-dense [tm, H*H].
        s = jnp.dot((a * b).astype(cdt), seg, preferred_element_type=jnp.float32)
        if mask is not None:
            s = s * mask          # multiplicative mask (faithful to the reference)
        # Global per-row max subtraction is exact inside every head segment.
        m = jnp.max(s, axis=-1, keepdims=True)
        p = jnp.exp(s - m)
        denom = jnp.dot(p.astype(cdt), segsum, preferred_element_type=jnp.float32)
        # EUP approximate reciprocal + one Newton step: f32-accurate, VALU-free.
        r = pl.reciprocal(denom, approx=True)
        r = r * (2.0 - denom * r)
        p = p * r
        pexp = jnp.dot(p.astype(cdt), expand, preferred_element_type=jnp.float32)
        # Head-combine + (bias-free) output projection folded into one matmul.
        return jnp.dot((pexp * vt).astype(cdt), cwo,
                       preferred_element_type=jnp.float32)

    # TODO(synk): nn.Dropout omitted (inference / eval mode -> identity).

    # ---- masked self-attention: q = k = v = x @ Wq1 (one base projection) ----
    p1 = jnp.dot(x.astype(cdt), wq1_ref[...], preferred_element_type=jnp.float32)
    t1 = tile_heads(p1)
    mha1 = attention(rep_heads(p1), t1, t1, cwo1_ref[...], mask_row)
    h1 = layer_norm(x + mha1, ln[0:1, :], ln[1:2, :])

    # ---- cross-attention: q = k = enc @ Wq2, v = x @ Wq2, no mask ----
    # (projected here, not at the top, to keep [tm, H*D] live ranges short)
    enc = enc_ref[...].astype(jnp.float32)
    pe = jnp.dot(enc.astype(cdt), wq2_ref[...], preferred_element_type=jnp.float32)
    pv = jnp.dot(x.astype(cdt), wq2_ref[...], preferred_element_type=jnp.float32)
    mha2 = attention(rep_heads(pe), tile_heads(pe), tile_heads(pv),
                     cwo2_ref[...], None)
    h2 = layer_norm(h1 + mha2, ln[2:3, :], ln[3:4, :])

    # ---- feed-forward ----
    ff = jnp.dot(h2.astype(cdt), w1t_ref[...], preferred_element_type=jnp.float32)
    ff = jnp.maximum(ff + bias1, 0.0)
    ff = jnp.dot(ff.astype(cdt), w2t_ref[...], preferred_element_type=jnp.float32)
    ff = ff + bias2

    o_ref[...] = layer_norm(h2 + ff, ln[4:5, :], ln[5:6, :]).astype(o_ref.dtype)


def prepare_decoder_params(params, num_heads, *, matmul_dtype=jnp.float32):
    """One-time, host-side packing of the Decoder weights for the fused kernel.

    Hoisted out of the per-call path: transposes, the 0/1 segment matrices, the
    head-combine row gather of Wo.T and the packed small-constants block are all
    computed once at parameter-load time.  matmul_dtype=jnp.bfloat16 selects the
    native MXU dtype on v5e/v6e/v7x (all elementwise math stays f32 in-kernel).
    """
    D = params["wq1"].shape[0]
    H = num_heads
    assert D % H == 0
    Dh, HD, HH = D // H, H * D, H * H
    hid = params["w1"].shape[0]

    # 0/1 matrices driving the all-head-pairs score / softmax / combine matmuls.
    r = jnp.arange(HD)
    h_r = r // D                        # head owning this D-wide lane group
    e_r = (r % D) // Dh                 # "other head" index inside the group
    c = jnp.arange(HH)
    seg01 = ((c[None, :] // H == h_r[:, None]) &
             (c[None, :] % H == e_r[:, None])).astype(jnp.float32)         # [HD, HH]
    segsum = ((c[:, None] // H) == (c[None, :] // H)).astype(jnp.float32)  # [HH, HH]
    expand = seg01.T                                                       # [HH, HD]
    seg = seg01 * (1.0 / math.sqrt(float(D)))   # fold 1/sqrt(d_model) into the sum

    # Head-combine folded into the output projection: row gather of Wo.T.
    colmap = (r // D) * Dh + (r % D) % Dh
    cwo1 = params["wo1"].T[colmap, :]                                      # [HD, D]
    cwo2 = params["wo2"].T[colmap, :]                                      # [HD, D]

    # Tiny constants packed into one block (one DMA stream instead of four):
    # row 0 = mask (filled per call), row 1 = FFN bias1, row 2 = FFN bias2,
    # rows 3..8 = LayerNorm gammas/betas.
    W = max(HH, hid, D)
    consts = jnp.zeros((9, W), jnp.float32)
    consts = consts.at[0, :HH].set(1.0)
    consts = consts.at[1, :hid].set(params["bf1"].astype(jnp.float32))
    consts = consts.at[2, :D].set(params["bf2"].astype(jnp.float32))
    ln = jnp.stack([params["g1"], params["b1"], params["g2"],
                    params["b2"], params["g3"], params["b3"]], axis=0)
    consts = consts.at[3:9, :D].set(ln.astype(jnp.float32))

    cast = lambda a: a.astype(matmul_dtype)
    return dict(
        D=D, H=H, hid=hid, W=W,
        wq1t=cast(params["wq1"].T), wq2t=cast(params["wq2"].T),
        seg=cast(seg), segsum=cast(segsum), expand=cast(expand),
        cwo1=cast(cwo1), cwo2=cast(cwo2),
        w1t=cast(params["w1"].T), w2t=cast(params["w2"].T),
        consts_base=consts,
    )


def decoder_forward(x, enc, mask, prepped):
    """Fused Decoder forward.  `prepped` comes from prepare_decoder_params."""
    B, S, D = x.shape
    H, hid, W = prepped["H"], prepped["hid"], prepped["W"]
    assert D == prepped["D"]
    HD, HH = H * D, H * H
    M = B * S
    assert M % 8 == 0, "B*S must be a multiple of 8 (sublane tiling)"

    # Only the mask row changes per call; everything else was packed once.
    mask_row = (jnp.ones((HH,), jnp.float32) if mask is None
                else mask.astype(jnp.float32).reshape(HH))
    consts = prepped["consts_base"].at[0, :HH].set(mask_row)

    x_flat = x.reshape(M, D)
    enc_flat = enc.reshape(M, D)

    # Row tile: large enough to amortise the ~0.35us/step overhead and fill the
    # MXU, small enough that live f32 [tm, H*D] intermediates stay well under
    # v7x's 64 MiB VMEM, and capped at M//2 so the "parallel" grid axis has at
    # least 2 steps to shard across v7x's two TensorCores.
    bytes_per_row = 4 * (4 * HD + 2 * hid + 8 * D)      # rough live-intermediate bytes
    cap = min(512, max(8, M // 2), max(8, ((8 << 20) // bytes_per_row) // 8 * 8))
    tm = max(t for t in range(8, cap + 1, 8) if M % t == 0)

    # Explicit VMEM budget from the real footprint (single-buffered weights,
    # double-buffered row tiles, live intermediates) with headroom; the scoped
    # defaults (16/32 MiB) are too small for realistic D / d_ff.
    w_item = jnp.dtype(prepped["wq1t"].dtype).itemsize
    weight_bytes = w_item * (2 * D * D + HD * HH + HH * HH + HH * HD
                             + 2 * HD * D + D * hid + hid * D)
    act_bytes = 4 * tm * (2 * 3 * D) + tm * bytes_per_row
    vmem_bytes = int(1.5 * (weight_bytes + 4 * consts.size + act_bytes)) + (2 << 20)
    vmem_bytes = int(min(max(vmem_bytes, 16 << 20), 64 << 20))

    kernel = functools.partial(_decoder_kernel, D=D, H=H, HID=hid, eps=1e-5,
                               compute_dtype=prepped["wq1t"].dtype)

    def run(single_buffer_consts):
        if single_buffer_consts:
            # Constant-index blocks are fetched once; one pipeline buffer is
            # enough and halves their VMEM residency.
            const = lambda shape: pl.BlockSpec(shape, lambda i: (0, 0),
                                               pipeline_mode=pl.Buffered(1))
        else:
            const = lambda shape: pl.BlockSpec(shape, lambda i: (0, 0))
        row = pl.BlockSpec((tm, D), lambda i: (i, 0))
        return pl.pallas_call(
            kernel,
            out_shape=jax.ShapeDtypeStruct((M, D), x.dtype),
            grid_spec=pltpu.PrefetchScalarGridSpec(
                num_scalar_prefetch=0,
                grid=(M // tm,),
                in_specs=[
                    row,                    # x rows
                    row,                    # encoder_output rows
                    const((D, D)),          # Wq1.T
                    const((D, D)),          # Wq2.T
                    const((HD, HH)),        # seg    (score segment-sum, x 1/sqrt(D))
                    const((HH, HH)),        # segsum (per-head softmax denominator)
                    const((HH, HD)),        # expand (broadcast p over Dh lanes)
                    const((HD, D)),         # cwo1   (head-combine + Wo1)
                    const((HD, D)),         # cwo2   (head-combine + Wo2)
                    const((D, hid)),        # FFN W1.T
                    const((hid, D)),        # FFN W2.T
                    const((9, W)),          # packed mask / biases / LN params
                ],
                out_specs=pl.BlockSpec((tm, D), lambda i: (i, 0)),
            ),
            compiler_params=pltpu.CompilerParams(
                dimension_semantics=("parallel",),
                vmem_limit_bytes=vmem_bytes),
        )(x_flat, enc_flat, prepped["wq1t"], prepped["wq2t"], prepped["seg"],
          prepped["segsum"], prepped["expand"], prepped["cwo1"], prepped["cwo2"],
          prepped["w1t"], prepped["w2t"], consts)

    try:
        out = run(True)
    except Exception:
        # TODO(synk): pipeline_mode=pl.Buffered(1) unsupported by this JAX build;
        # fall back to default double-buffered constant blocks (same semantics).
        out = run(False)

    return out.reshape(B, S, D)


# ----------------------------- plain-JAX reference -----------------------------

def _layer_norm_ref(x, g, b, eps=1e-5):
    mu = jnp.mean(x, axis=-1, keepdims=True)
    var = jnp.mean((x - mu) ** 2, axis=-1, keepdims=True)
    return (x - mu) / jnp.sqrt(var + eps) * g + b


def _mha_ref(q, k, v, wq, wo, num_heads, mask=None):
    B, S, D = q.shape
    Dh = D // num_heads
    qp, kp, vp = q @ wq.T, k @ wq.T, v @ wq.T          # all use the query weights
    qh = qp.reshape(B, S, num_heads, Dh)
    kh = kp.reshape(B, S, num_heads, Dh)
    vh = vp.reshape(B, S, num_heads, Dh)
    score = jnp.einsum("bshd,bsed->bshe", qh, kh) / math.sqrt(float(D))
    if mask is not None:
        score = score * mask
    p = jax.nn.softmax(score, axis=-1)
    attn = jnp.einsum("bshe,bsed->bshd", p, vh)
    return attn.reshape(B, S, D) @ wo.T


def _decoder_ref(x, enc, mask, params, num_heads):
    m1 = _mha_ref(x, x, x, params["wq1"], params["wo1"], num_heads, mask)
    h1 = _layer_norm_ref(x + m1, params["g1"], params["b1"])
    m2 = _mha_ref(enc, enc, x, params["wq2"], params["wo2"], num_heads, None)
    h2 = _layer_norm_ref(h1 + m2, params["g2"], params["b2"])
    ff = jnp.maximum(h2 @ params["w1"].T + params["bf1"], 0.0) @ params["w2"].T + params["bf2"]
    return _layer_norm_ref(h2 + ff, params["g3"], params["b3"])


if __name__ == "__main__":
    B, S, D, H, HID = 2, 8, 32, 4, 64

    key = jax.random.PRNGKey(0)
    keys = jax.random.split(key, 16)

    x = jax.random.normal(keys[0], (B, S, D), jnp.float32)
    enc = jax.random.normal(keys[1], (B, S, D), jnp.float32)
    # Multiplicative 0/1 mask over the (head, head) score axis of the reference
    # attention (the reference's score shape is [B, S, H, H]).
    mask = jnp.tril(jnp.ones((H, H), jnp.float32))

    bd = 1.0 / math.sqrt(D)
    bh = 1.0 / math.sqrt(HID)
    params = {
        # MHA weights (PyTorch Linear stores (out_features, in_features)).
        "wq1": jax.random.uniform(keys[2], (D, D), jnp.float32, -bd, bd),
        "wo1": jax.random.uniform(keys[3], (D, D), jnp.float32, -bd, bd),
        "wq2": jax.random.uniform(keys[4], (D, D), jnp.float32, -bd, bd),
        "wo2": jax.random.uniform(keys[5], (D, D), jnp.float32, -bd, bd),
        # FeedForward.
        "w1": jax.random.uniform(keys[6], (HID, D), jnp.float32, -bd, bd),
        "bf1": jax.random.uniform(keys[7], (HID,), jnp.float32, -bd, bd),
        "w2": jax.random.uniform(keys[8], (D, HID), jnp.float32, -bh, bh),
        "bf2": jax.random.uniform(keys[9], (D,), jnp.float32, -bh, bh),
        # LayerNorms.
        "g1": jax.random.uniform(keys[10], (D,), jnp.float32, 0.5, 1.5),
        "b1": jax.random.uniform(keys[11], (D,), jnp.float32, -0.5, 0.5),
        "g2": jax.random.uniform(keys[12], (D,), jnp.float32, 0.5, 1.5),
        "b2": jax.random.uniform(keys[13], (D,), jnp.float32, -0.5, 0.5),
        "g3": jax.random.uniform(keys[14], (D,), jnp.float32, 0.5, 1.5),
        "b3": jax.random.uniform(keys[15], (D,), jnp.float32, -0.5, 0.5),
    }
    # values_linear / key_linear weights exist in the module but are unused in forward.

    ref = _decoder_ref(x, enc, mask, params, H)

    # f32 MXU-input path: strict parity with the reference.
    prepped = prepare_decoder_params(params, H)
    out = jax.block_until_ready(decoder_forward(x, enc, mask, prepped))
    assert out.shape == (B, S, D)
    max_err = float(jnp.max(jnp.abs(out - ref)))
    assert jnp.allclose(out, ref, atol=1e-4, rtol=1e-4), f"f32 path mismatch: {max_err}"

    # bf16 MXU-input path (native MXU dtype on v5e/v6e/v7x; halves weight VMEM/DMA).
    # Elementwise math stays f32, so only matmul rounding differs -> loose check.
    prepped_bf16 = prepare_decoder_params(params, H, matmul_dtype=jnp.bfloat16)
    out_bf16 = jax.block_until_ready(decoder_forward(x, enc, mask, prepped_bf16))
    rel = float(jnp.linalg.norm(out_bf16 - ref) / jnp.linalg.norm(ref))
    assert rel < 5e-2, f"bf16 path diverged: relative RMS error {rel}"

    print("KERNEL_OK")
</pallas_src>

<mosaic_0001>
module attributes {stable_mosaic.version = 11 : i64} {
  func.func @_decoder_kernel(%arg0: i32, %arg1: memref<8x32xf32, #tpu.memory_space<vmem>>, %arg2: memref<8x32xf32, #tpu.memory_space<vmem>>, %arg3: memref<32x32xf32, #tpu.memory_space<vmem>>, %arg4: memref<32x32xf32, #tpu.memory_space<vmem>>, %arg5: memref<128x16xf32, #tpu.memory_space<vmem>>, %arg6: memref<16x16xf32, #tpu.memory_space<vmem>>, %arg7: memref<16x128xf32, #tpu.memory_space<vmem>>, %arg8: memref<128x32xf32, #tpu.memory_space<vmem>>, %arg9: memref<128x32xf32, #tpu.memory_space<vmem>>, %arg10: memref<32x64xf32, #tpu.memory_space<vmem>>, %arg11: memref<64x32xf32, #tpu.memory_space<vmem>>, %arg12: memref<9x64xf32, #tpu.memory_space<vmem>>, %arg13: memref<8x32xf32, #tpu.memory_space<vmem>>) attributes {dimension_semantics = [#tpu.dimension_semantics<parallel>], iteration_bounds = array<i64: 2>, scalar_prefetch = 0 : i64, scratch_operands = 0 : i64, tpu.core_type = #tpu.core_type<tc>, window_params = [{transform_indices = @transform_0, window_bounds = array<i64: 8, 32>}, {transform_indices = @transform_1, window_bounds = array<i64: 8, 32>}, {pipeline_mode = #tpu.pipeline_mode<synchronous>, transform_indices = @transform_2, window_bounds = array<i64: 32, 32>}, {pipeline_mode = #tpu.pipeline_mode<synchronous>, transform_indices = @transform_3, window_bounds = array<i64: 32, 32>}, {pipeline_mode = #tpu.pipeline_mode<synchronous>, transform_indices = @transform_4, window_bounds = array<i64: 128, 16>}, {pipeline_mode = #tpu.pipeline_mode<synchronous>, transform_indices = @transform_5, window_bounds = array<i64: 16, 16>}, {pipeline_mode = #tpu.pipeline_mode<synchronous>, transform_indices = @transform_6, window_bounds = array<i64: 16, 128>}, {pipeline_mode = #tpu.pipeline_mode<synchronous>, transform_indices = @transform_7, window_bounds = array<i64: 128, 32>}, {pipeline_mode = #tpu.pipeline_mode<synchronous>, transform_indices = @transform_8, window_bounds = array<i64: 128, 32>}, {pipeline_mode = #tpu.pipeline_mode<synchronous>, transform_indices = @transform_9, window_bounds = array<i64: 32, 64>}, {pipeline_mode = #tpu.pipeline_mode<synchronous>, transform_indices = @transform_10, window_bounds = array<i64: 64, 32>}, {pipeline_mode = #tpu.pipeline_mode<synchronous>, transform_indices = @transform_11, window_bounds = array<i64: 9, 64>}, {transform_indices = @transform_12, window_bounds = array<i64: 8, 32>}]} {
    %c0 = arith.constant 0 : index
    %c0_0 = arith.constant 0 : index
    %0 = vector.load %arg1[%c0, %c0_0] : memref<8x32xf32, #tpu.memory_space<vmem>>, vector<8x32xf32>
    %c0_1 = arith.constant 0 : index
    %c0_2 = arith.constant 0 : index
    %1 = vector.load %arg12[%c0_1, %c0_2] : memref<9x64xf32, #tpu.memory_space<vmem>>, vector<9x64xf32>
    %2 = vector.extract_strided_slice %1 {offsets = [0, 0], sizes = [1, 16], strides = [1, 1]} : vector<9x64xf32> to vector<1x16xf32>
    %3 = vector.extract_strided_slice %1 {offsets = [1, 0], sizes = [1, 64], strides = [1, 1]} : vector<9x64xf32> to vector<1x64xf32>
    %4 = vector.extract_strided_slice %1 {offsets = [2, 0], sizes = [1, 32], strides = [1, 1]} : vector<9x64xf32> to vector<1x32xf32>
    %5 = vector.extract_strided_slice %1 {offsets = [3, 0], sizes = [6, 32], strides = [1, 1]} : vector<9x64xf32> to vector<6x32xf32>
    %c0_3 = arith.constant 0 : index
    %c0_4 = arith.constant 0 : index
    %6 = vector.load %arg5[%c0_3, %c0_4] : memref<128x16xf32, #tpu.memory_space<vmem>>, vector<128x16xf32>
    %c0_5 = arith.constant 0 : index
    %c0_6 = arith.constant 0 : index
    %7 = vector.load %arg6[%c0_5, %c0_6] : memref<16x16xf32, #tpu.memory_space<vmem>>, vector<16x16xf32>
    %c0_7 = arith.constant 0 : index
    %c0_8 = arith.constant 0 : index
    %8 = vector.load %arg7[%c0_7, %c0_8] : memref<16x128xf32, #tpu.memory_space<vmem>>, vector<16x128xf32>
    %c0_9 = arith.constant 0 : index
    %c0_10 = arith.constant 0 : index
    %9 = vector.load %arg3[%c0_9, %c0_10] : memref<32x32xf32, #tpu.memory_space<vmem>>, vector<32x32xf32>
    %cst = arith.constant dense<0.000000e+00> : vector<8x32xf32>
    %10 = tpu.matmul %0, %9, %cst {dimension_numbers = #tpu.dot_dimension_numbers<[1], [0], [0], [1], [0, 0, 1, 1], [], []>} : vector<8x32xf32>, vector<32x32xf32>, vector<8x32xf32> -> vector<8x32xf32>
    %11 = tpu.concatenate %10, %10, %10, %10 in 1 : vector<8x32xf32>, vector<8x32xf32>, vector<8x32xf32>, vector<8x32xf32> -> vector<8x128xf32>
    %12 = vector.extract_strided_slice %10 {offsets = [0, 0], sizes = [8, 8], strides = [1, 1]} : vector<8x32xf32> to vector<8x8xf32>
    %13 = vector.extract_strided_slice %10 {offsets = [0, 8], sizes = [8, 8], strides = [1, 1]} : vector<8x32xf32> to vector<8x8xf32>
    %14 = vector.extract_strided_slice %10 {offsets = [0, 16], sizes = [8, 8], strides = [1, 1]} : vector<8x32xf32> to vector<8x8xf32>
    %15 = vector.extract_strided_slice %10 {offsets = [0, 24], sizes = [8, 8], strides = [1, 1]} : vector<8x32xf32> to vector<8x8xf32>
    %16 = tpu.concatenate %12, %12, %12, %12, %13, %13, %13, %13, %14, %14, %14, %14, %15, %15, %15, %15 in 1 : vector<8x8xf32>, vector<8x8xf32>, vector<8x8xf32>, vector<8x8xf32>, vector<8x8xf32>, vector<8x8xf32>, vector<8x8xf32>, vector<8x8xf32>, vector<8x8xf32>, vector<8x8xf32>, vector<8x8xf32>, vector<8x8xf32>, vector<8x8xf32>, vector<8x8xf32>, vector<8x8xf32>, vector<8x8xf32> -> vector<8x128xf32>
    %c0_11 = arith.constant 0 : index
    %c0_12 = arith.constant 0 : index
    %17 = vector.load %arg8[%c0_11, %c0_12] : memref<128x32xf32, #tpu.memory_space<vmem>>, vector<128x32xf32>
    %18 = arith.mulf %16, %11 : vector<8x128xf32>
    %cst_13 = arith.constant dense<0.000000e+00> : vector<8x16xf32>
    %19 = tpu.matmul %18, %6, %cst_13 {dimension_numbers = #tpu.dot_dimension_numbers<[1], [0], [0], [1], [0, 0, 1, 1], [], []>} : vector<8x128xf32>, vector<128x16xf32>, vector<8x16xf32> -> vector<8x16xf32>
    %20 = vector.broadcast %2 : vector<1x16xf32> to vector<8x16xf32>
    %21 = arith.mulf %19, %20 : vector<8x16xf32>
    %cst_14 = arith.constant dense<0xFF800000> : vector<8xf32>
    %22 = vector.multi_reduction <maximumf>, %21, %cst_14 [1] : vector<8x16xf32> to vector<8xf32>
    %23 = vector.shape_cast %22 : vector<8xf32> to vector<8x1xf32>
    %24 = vector.broadcast %23 : vector<8x1xf32> to vector<8x16xf32>
    %25 = arith.subf %21, %24 : vector<8x16xf32>
    %26 = math.exp %25 : vector<8x16xf32>
    %cst_15 = arith.constant dense<0.000000e+00> : vector<8x16xf32>
    %27 = tpu.matmul %26, %7, %cst_15 {dimension_numbers = #tpu.dot_dimension_numbers<[1], [0], [0], [1], [0, 0, 1, 1], [], []>} : vector<8x16xf32>, vector<16x16xf32>, vector<8x16xf32> -> vector<8x16xf32>
    %28 = tpu.reciprocal %27 {approx = true} : vector<8x16xf32> -> vector<8x16xf32>
    %29 = arith.mulf %27, %28 : vector<8x16xf32>
    %cst_16 = arith.constant 2.000000e+00 : f32
    %30 = vector.broadcast %cst_16 : f32 to vector<8x16xf32>
    %31 = arith.subf %30, %29 : vector<8x16xf32>
    %32 = arith.mulf %28, %31 : vector<8x16xf32>
    %33 = arith.mulf %26, %32 : vector<8x16xf32>
    %cst_17 = arith.constant dense<0.000000e+00> : vector<8x128xf32>
    %34 = tpu.matmul %33, %8, %cst_17 {dimension_numbers = #tpu.dot_dimension_numbers<[1], [0], [0], [1], [0, 0, 1, 1], [], []>} : vector<8x16xf32>, vector<16x128xf32>, vector<8x128xf32> -> vector<8x128xf32>
    %35 = arith.mulf %34, %11 : vector<8x128xf32>
    %cst_18 = arith.constant dense<0.000000e+00> : vector<8x32xf32>
    %36 = tpu.matmul %35, %17, %cst_18 {dimension_numbers = #tpu.dot_dimension_numbers<[1], [0], [0], [1], [0, 0, 1, 1], [], []>} : vector<8x128xf32>, vector<128x32xf32>, vector<8x32xf32> -> vector<8x32xf32>
    %37 = arith.addf %0, %36 : vector<8x32xf32>
    %38 = vector.extract_strided_slice %5 {offsets = [0, 0], sizes = [1, 32], strides = [1, 1]} : vector<6x32xf32> to vector<1x32xf32>
    %39 = vector.extract_strided_slice %5 {offsets = [1, 0], sizes = [1, 32], strides = [1, 1]} : vector<6x32xf32> to vector<1x32xf32>
    %cst_19 = arith.constant dense<0.000000e+00> : vector<8xf32>
    %40 = vector.multi_reduction <add>, %37, %cst_19 [1] : vector<8x32xf32> to vector<8xf32>
    %41 = vector.shape_cast %40 : vector<8xf32> to vector<8x1xf32>
    %cst_20 = arith.constant 3.200000e+01 : f32
    %42 = vector.broadcast %cst_20 : f32 to vector<8x1xf32>
    %43 = arith.divf %41, %42 : vector<8x1xf32>
    %44 = vector.broadcast %43 : vector<8x1xf32> to vector<8x32xf32>
    %45 = arith.subf %37, %44 : vector<8x32xf32>
    %46 = arith.mulf %45, %45 : vector<8x32xf32>
    %cst_21 = arith.constant dense<0.000000e+00> : vector<8xf32>
    %47 = vector.multi_reduction <add>, %46, %cst_21 [1] : vector<8x32xf32> to vector<8xf32>
    %48 = vector.shape_cast %47 : vector<8xf32> to vector<8x1xf32>
    %cst_22 = arith.constant 3.200000e+01 : f32
    %49 = vector.broadcast %cst_22 : f32 to vector<8x1xf32>
    %50 = arith.divf %48, %49 : vector<8x1xf32>
    %cst_23 = arith.constant 9.99999974E-6 : f32
    %51 = vector.broadcast %cst_23 : f32 to vector<8x1xf32>
    %52 = arith.addf %50, %51 : vector<8x1xf32>
    %53 = math.rsqrt %52 : vector<8x1xf32>
    %54 = vector.broadcast %53 : vector<8x1xf32> to vector<8x32xf32>
    %55 = arith.mulf %45, %54 : vector<8x32xf32>
    %56 = vector.broadcast %38 : vector<1x32xf32> to vector<8x32xf32>
    %57 = arith.mulf %55, %56 : vector<8x32xf32>
    %58 = vector.broadcast %39 : vector<1x32xf32> to vector<8x32xf32>
    %59 = arith.addf %57, %58 : vector<8x32xf32>
    %c0_24 = arith.constant 0 : index
    %c0_25 = arith.constant 0 : index
    %60 = vector.load %arg2[%c0_24, %c0_25] : memref<8x32xf32, #tpu.memory_space<vmem>>, vector<8x32xf32>
    %c0_26 = arith.constant 0 : index
    %c0_27 = arith.constant 0 : index
    %61 = vector.load %arg4[%c0_26, %c0_27] : memref<32x32xf32, #tpu.memory_space<vmem>>, vector<32x32xf32>
    %cst_28 = arith.constant dense<0.000000e+00> : vector<8x32xf32>
    %62 = tpu.matmul %60, %61, %cst_28 {dimension_numbers = #tpu.dot_dimension_numbers<[1], [0], [0], [1], [0, 0, 1, 1], [], []>} : vector<8x32xf32>, vector<32x32xf32>, vector<8x32xf32> -> vector<8x32xf32>
    %c0_29 = arith.constant 0 : index
    %c0_30 = arith.constant 0 : index
    %63 = vector.load %arg4[%c0_29, %c0_30] : memref<32x32xf32, #tpu.memory_space<vmem>>, vector<32x32xf32>
    %cst_31 = arith.constant dense<0.000000e+00> : vector<8x32xf32>
    %64 = tpu.matmul %0, %63, %cst_31 {dimension_numbers = #tpu.dot_dimension_numbers<[1], [0], [0], [1], [0, 0, 1, 1], [], []>} : vector<8x32xf32>, vector<32x32xf32>, vector<8x32xf32> -> vector<8x32xf32>
    %65 = vector.extract_strided_slice %62 {offsets = [0, 0], sizes = [8, 8], strides = [1, 1]} : vector<8x32xf32> to vector<8x8xf32>
    %66 = vector.extract_strided_slice %62 {offsets = [0, 8], sizes = [8, 8], strides = [1, 1]} : vector<8x32xf32> to vector<8x8xf32>
    %67 = vector.extract_strided_slice %62 {offsets = [0, 16], sizes = [8, 8], strides = [1, 1]} : vector<8x32xf32> to vector<8x8xf32>
    %68 = vector.extract_strided_slice %62 {offsets = [0, 24], sizes = [8, 8], strides = [1, 1]} : vector<8x32xf32> to vector<8x8xf32>
    %69 = tpu.concatenate %65, %65, %65, %65, %66, %66, %66, %66, %67, %67, %67, %67, %68, %68, %68, %68 in 1 : vector<8x8xf32>, vector<8x8xf32>, vector<8x8xf32>, vector<8x8xf32>, vector<8x8xf32>, vector<8x8xf32>, vector<8x8xf32>, vector<8x8xf32>, vector<8x8xf32>, vector<8x8xf32>, vector<8x8xf32>, vector<8x8xf32>, vector<8x8xf32>, vector<8x8xf32>, vector<8x8xf32>, vector<8x8xf32> -> vector<8x128xf32>
    %70 = tpu.concatenate %62, %62, %62, %62 in 1 : vector<8x32xf32>, vector<8x32xf32>, vector<8x32xf32>, vector<8x32xf32> -> vector<8x128xf32>
    %71 = tpu.concatenate %64, %64, %64, %64 in 1 : vector<8x32xf32>, vector<8x32xf32>, vector<8x32xf32>, vector<8x32xf32> -> vector<8x128xf32>
    %c0_32 = arith.constant 0 : index
    %c0_33 = arith.constant 0 : index
    %72 = vector.load %arg9[%c0_32, %c0_33] : memref<128x32xf32, #tpu.memory_space<vmem>>, vector<128x32xf32>
    %73 = arith.mulf %69, %70 : vector<8x128xf32>
    %cst_34 = arith.constant dense<0.000000e+00> : vector<8x16xf32>
    %74 = tpu.matmul %73, %6, %cst_34 {dimension_numbers = #tpu.dot_dimension_numbers<[1], [0], [0], [1], [0, 0, 1, 1], [], []>} : vector<8x128xf32>, vector<128x16xf32>, vector<8x16xf32> -> vector<8x16xf32>
    %cst_35 = arith.constant dense<0xFF800000> : vector<8xf32>
    %75 = vector.multi_reduction <maximumf>, %74, %cst_35 [1] : vector<8x16xf32> to vector<8xf32>
    %76 = vector.shape_cast %75 : vector<8xf32> to vector<8x1xf32>
    %77 = vector.broadcast %76 : vector<8x1xf32> to vector<8x16xf32>
    %78 = arith.subf %74, %77 : vector<8x16xf32>
    %79 = math.exp %78 : vector<8x16xf32>
    %cst_36 = arith.constant dense<0.000000e+00> : vector<8x16xf32>
    %80 = tpu.matmul %79, %7, %cst_36 {dimension_numbers = #tpu.dot_dimension_numbers<[1], [0], [0], [1], [0, 0, 1, 1], [], []>} : vector<8x16xf32>, vector<16x16xf32>, vector<8x16xf32> -> vector<8x16xf32>
    %81 = tpu.reciprocal %80 {approx = true} : vector<8x16xf32> -> vector<8x16xf32>
    %82 = arith.mulf %80, %81 : vector<8x16xf32>
    %cst_37 = arith.constant 2.000000e+00 : f32
    %83 = vector.broadcast %cst_37 : f32 to vector<8x16xf32>
    %84 = arith.subf %83, %82 : vector<8x16xf32>
    %85 = arith.mulf %81, %84 : vector<8x16xf32>
    %86 = arith.mulf %79, %85 : vector<8x16xf32>
    %cst_38 = arith.constant dense<0.000000e+00> : vector<8x128xf32>
    %87 = tpu.matmul %86, %8, %cst_38 {dimension_numbers = #tpu.dot_dimension_numbers<[1], [0], [0], [1], [0, 0, 1, 1], [], []>} : vector<8x16xf32>, vector<16x128xf32>, vector<8x128xf32> -> vector<8x128xf32>
    %88 = arith.mulf %87, %71 : vector<8x128xf32>
    %cst_39 = arith.constant dense<0.000000e+00> : vector<8x32xf32>
    %89 = tpu.matmul %88, %72, %cst_39 {dimension_numbers = #tpu.dot_dimension_numbers<[1], [0], [0], [1], [0, 0, 1, 1], [], []>} : vector<8x128xf32>, vector<128x32xf32>, vector<8x32xf32> -> vector<8x32xf32>
    %90 = arith.addf %59, %89 : vector<8x32xf32>
    %91 = vector.extract_strided_slice %5 {offsets = [2, 0], sizes = [1, 32], strides = [1, 1]} : vector<6x32xf32> to vector<1x32xf32>
    %92 = vector.extract_strided_slice %5 {offsets = [3, 0], sizes = [1, 32], strides = [1, 1]} : vector<6x32xf32> to vector<1x32xf32>
    %cst_40 = arith.constant dense<0.000000e+00> : vector<8xf32>
    %93 = vector.multi_reduction <add>, %90, %cst_40 [1] : vector<8x32xf32> to vector<8xf32>
    %94 = vector.shape_cast %93 : vector<8xf32> to vector<8x1xf32>
    %cst_41 = arith.constant 3.200000e+01 : f32
    %95 = vector.broadcast %cst_41 : f32 to vector<8x1xf32>
    %96 = arith.divf %94, %95 : vector<8x1xf32>
    %97 = vector.broadcast %96 : vector<8x1xf32> to vector<8x32xf32>
    %98 = arith.subf %90, %97 : vector<8x32xf32>
    %99 = arith.mulf %98, %98 : vector<8x32xf32>
    %cst_42 = arith.constant dense<0.000000e+00> : vector<8xf32>
    %100 = vector.multi_reduction <add>, %99, %cst_42 [1] : vector<8x32xf32> to vector<8xf32>
    %101 = vector.shape_cast %100 : vector<8xf32> to vector<8x1xf32>
    %cst_43 = arith.constant 3.200000e+01 : f32
    %102 = vector.broadcast %cst_43 : f32 to vector<8x1xf32>
    %103 = arith.divf %101, %102 : vector<8x1xf32>
    %cst_44 = arith.constant 9.99999974E-6 : f32
    %104 = vector.broadcast %cst_44 : f32 to vector<8x1xf32>
    %105 = arith.addf %103, %104 : vector<8x1xf32>
    %106 = math.rsqrt %105 : vector<8x1xf32>
    %107 = vector.broadcast %106 : vector<8x1xf32> to vector<8x32xf32>
    %108 = arith.mulf %98, %107 : vector<8x32xf32>
    %109 = vector.broadcast %91 : vector<1x32xf32> to vector<8x32xf32>
    %110 = arith.mulf %108, %109 : vector<8x32xf32>
    %111 = vector.broadcast %92 : vector<1x32xf32> to vector<8x32xf32>
    %112 = arith.addf %110, %111 : vector<8x32xf32>
    %c0_45 = arith.constant 0 : index
    %c0_46 = arith.constant 0 : index
    %113 = vector.load %arg10[%c0_45, %c0_46] : memref<32x64xf32, #tpu.memory_space<vmem>>, vector<32x64xf32>
    %cst_47 = arith.constant dense<0.000000e+00> : vector<8x64xf32>
    %114 = tpu.matmul %112, %113, %cst_47 {dimension_numbers = #tpu.dot_dimension_numbers<[1], [0], [0], [1], [0, 0, 1, 1], [], []>} : vector<8x32xf32>, vector<32x64xf32>, vector<8x64xf32> -> vector<8x64xf32>
    %115 = vector.broadcast %3 : vector<1x64xf32> to vector<8x64xf32>
    %116 = arith.addf %114, %115 : vector<8x64xf32>
    %cst_48 = arith.constant 0.000000e+00 : f32
    %117 = vector.broadcast %cst_48 : f32 to vector<8x64xf32>
    %118 = arith.maximumf %116, %117 : vector<8x64xf32>
    %c0_49 = arith.constant 0 : index
    %c0_50 = arith.constant 0 : index
    %119 = vector.load %arg11[%c0_49, %c0_50] : memref<64x32xf32, #tpu.memory_space<vmem>>, vector<64x32xf32>
    %cst_51 = arith.constant dense<0.000000e+00> : vector<8x32xf32>
    %120 = tpu.matmul %118, %119, %cst_51 {dimension_numbers = #tpu.dot_dimension_numbers<[1], [0], [0], [1], [0, 0, 1, 1], [], []>} : vector<8x64xf32>, vector<64x32xf32>, vector<8x32xf32> -> vector<8x32xf32>
    %121 = vector.broadcast %4 : vector<1x32xf32> to vector<8x32xf32>
    %122 = arith.addf %120, %121 : vector<8x32xf32>
    %123 = arith.addf %112, %122 : vector<8x32xf32>
    %124 = vector.extract_strided_slice %5 {offsets = [4, 0], sizes = [1, 32], strides = [1, 1]} : vector<6x32xf32> to vector<1x32xf32>
    %125 = vector.extract_strided_slice %5 {offsets = [5, 0], sizes = [1, 32], strides = [1, 1]} : vector<6x32xf32> to vector<1x32xf32>
    %cst_52 = arith.constant dense<0.000000e+00> : vector<8xf32>
    %126 = vector.multi_reduction <add>, %123, %cst_52 [1] : vector<8x32xf32> to vector<8xf32>
    %127 = vector.shape_cast %126 : vector<8xf32> to vector<8x1xf32>
    %cst_53 = arith.constant 3.200000e+01 : f32
    %128 = vector.broadcast %cst_53 : f32 to vector<8x1xf32>
    %129 = arith.divf %127, %128 : vector<8x1xf32>
    %130 = vector.broadcast %129 : vector<8x1xf32> to vector<8x32xf32>
    %131 = arith.subf %123, %130 : vector<8x32xf32>
    %132 = arith.mulf %131, %131 : vector<8x32xf32>
    %cst_54 = arith.constant dense<0.000000e+00> : vector<8xf32>
    %133 = vector.multi_reduction <add>, %132, %cst_54 [1] : vector<8x32xf32> to vector<8xf32>
    %134 = vector.shape_cast %133 : vector<8xf32> to vector<8x1xf32>
    %cst_55 = arith.constant 3.200000e+01 : f32
    %135 = vector.broadcast %cst_55 : f32 to vector<8x1xf32>
    %136 = arith.divf %134, %135 : vector<8x1xf32>
    %cst_56 = arith.constant 9.99999974E-6 : f32
    %137 = vector.broadcast %cst_56 : f32 to vector<8x1xf32>
    %138 = arith.addf %136, %137 : vector<8x1xf32>
    %139 = math.rsqrt %138 : vector<8x1xf32>
    %140 = vector.broadcast %139 : vector<8x1xf32> to vector<8x32xf32>
    %141 = arith.mulf %131, %140 : vector<8x32xf32>
    %142 = vector.broadcast %124 : vector<1x32xf32> to vector<8x32xf32>
    %143 = arith.mulf %141, %142 : vector<8x32xf32>
    %144 = vector.broadcast %125 : vector<1x32xf32> to vector<8x32xf32>
    %145 = arith.addf %143, %144 : vector<8x32xf32>
    %c0_57 = arith.constant 0 : index
    %c0_58 = arith.constant 0 : index
    %146 = vector.load %arg13[%c0_57, %c0_58] : memref<8x32xf32, #tpu.memory_space<vmem>>, vector<8x32xf32>
    tpu.vector_store %arg13[%c0_57, %c0_58], %145 {strides = array<i32>} : memref<8x32xf32, #tpu.memory_space<vmem>>, vector<8x32xf32>,
    return
  }
  func.func @transform_0(%arg0: i32) -> (i32, i32) {
    %c0_i32 = arith.constant 0 : i32
    %c0_i32_0 = arith.constant 0 : i32
    return %arg0, %c0_i32 : i32, i32
  }
  func.func @transform_1(%arg0: i32) -> (i32, i32) {
    %c0_i32 = arith.constant 0 : i32
    %c0_i32_0 = arith.constant 0 : i32
    return %arg0, %c0_i32 : i32, i32
  }
  func.func @transform_2(%arg0: i32) -> (i32, i32) {
    %c0_i32 = arith.constant 0 : i32
    %c0_i32_0 = arith.constant 0 : i32
    %c0_i32_1 = arith.constant 0 : i32
    return %c0_i32, %c0_i32_0 : i32, i32
  }
  func.func @transform_3(%arg0: i32) -> (i32, i32) {
    %c0_i32 = arith.constant 0 : i32
    %c0_i32_0 = arith.constant 0 : i32
    %c0_i32_1 = arith.constant 0 : i32
    return %c0_i32, %c0_i32_0 : i32, i32
  }
  func.func @transform_4(%arg0: i32) -> (i32, i32) {
    %c0_i32 = arith.constant 0 : i32
    %c0_i32_0 = arith.constant 0 : i32
    %c0_i32_1 = arith.constant 0 : i32
    return %c0_i32, %c0_i32_0 : i32, i32
  }
  func.func @transform_5(%arg0: i32) -> (i32, i32) {
    %c0_i32 = arith.constant 0 : i32
    %c0_i32_0 = arith.constant 0 : i32
    %c0_i32_1 = arith.constant 0 : i32
    return %c0_i32, %c0_i32_0 : i32, i32
  }
  func.func @transform_6(%arg0: i32) -> (i32, i32) {
    %c0_i32 = arith.constant 0 : i32
    %c0_i32_0 = arith.constant 0 : i32
    %c0_i32_1 = arith.constant 0 : i32
    return %c0_i32, %c0_i32_0 : i32, i32
  }
  func.func @transform_7(%arg0: i32) -> (i32, i32) {
    %c0_i32 = arith.constant 0 : i32
    %c0_i32_0 = arith.constant 0 : i32
    %c0_i32_1 = arith.constant 0 : i32
    return %c0_i32, %c0_i32_0 : i32, i32
  }
  func.func @transform_8(%arg0: i32) -> (i32, i32) {
    %c0_i32 = arith.constant 0 : i32
    %c0_i32_0 = arith.constant 0 : i32
    %c0_i32_1 = arith.constant 0 : i32
    return %c0_i32, %c0_i32_0 : i32, i32
  }
  func.func @transform_9(%arg0: i32) -> (i32, i32) {
    %c0_i32 = arith.constant 0 : i32
    %c0_i32_0 = arith.constant 0 : i32
    %c0_i32_1 = arith.constant 0 : i32
    return %c0_i32, %c0_i32_0 : i32, i32
  }
  func.func @transform_10(%arg0: i32) -> (i32, i32) {
    %c0_i32 = arith.constant 0 : i32
    %c0_i32_0 = arith.constant 0 : i32
    %c0_i32_1 = arith.constant 0 : i32
    return %c0_i32, %c0_i32_0 : i32, i32
  }
  func.func @transform_11(%arg0: i32) -> (i32, i32) {
    %c0_i32 = arith.constant 0 : i32
    %c0_i32_0 = arith.constant 0 : i32
    %c0_i32_1 = arith.constant 0 : i32
    return %c0_i32, %c0_i32_0 : i32, i32
  }
  func.func @transform_12(%arg0: i32) -> (i32, i32) {
    %c0_i32 = arith.constant 0 : i32
    %c0_i32_0 = arith.constant 0 : i32
    return %arg0, %c0_i32 : i32, i32
  }
}

module attributes {stable_mosaic.version = 11 : i64} {
  func.func @_decoder_kernel(%arg0: i32, %arg1: memref<8x32xf32, #tpu.memory_space<vmem>>, %arg2: memref<8x32xf32, #tpu.memory_space<vmem>>, %arg3: memref<32x32xf32, #tpu.memory_space<vmem>>, %arg4: memref<32x32xf32, #tpu.memory_space<vmem>>, %arg5: memref<128x16xf32, #tpu.memory_space<vmem>>, %arg6: memref<16x16xf32, #tpu.memory_space<vmem>>, %arg7: memref<16x128xf32, #tpu.memory_space<vmem>>, %arg8: memref<128x32xf32, #tpu.memory_space<vmem>>, %arg9: memref<128x32xf32, #tpu.memory_space<vmem>>, %arg10: memref<32x64xf32, #tpu.memory_space<vmem>>, %arg11: memref<64x32xf32, #tpu.memory_space<vmem>>, %arg12: memref<9x64xf32, #tpu.memory_space<vmem>>, %arg13: memref<8x32xf32, #tpu.memory_space<vmem>>) attributes {dimension_semantics = [#tpu.dimension_semantics<parallel>], iteration_bounds = array<i64: 2>, scalar_prefetch = 0 : i64, scratch_operands = 0 : i64, tpu.core_type = #tpu.core_type<tc>, window_params = [{transform_indices = @transform_0, window_bounds = array<i64: 8, 32>}, {transform_indices = @transform_1, window_bounds = array<i64: 8, 32>}, {pipeline_mode = #tpu.pipeline_mode<synchronous>, transform_indices = @transform_2, window_bounds = array<i64: 32, 32>}, {pipeline_mode = #tpu.pipeline_mode<synchronous>, transform_indices = @transform_3, window_bounds = array<i64: 32, 32>}, {pipeline_mode = #tpu.pipeline_mode<synchronous>, transform_indices = @transform_4, window_bounds = array<i64: 128, 16>}, {pipeline_mode = #tpu.pipeline_mode<synchronous>, transform_indices = @transform_5, window_bounds = array<i64: 16, 16>}, {pipeline_mode = #tpu.pipeline_mode<synchronous>, transform_indices = @transform_6, window_bounds = array<i64: 16, 128>}, {pipeline_mode = #tpu.pipeline_mode<synchronous>, transform_indices = @transform_7, window_bounds = array<i64: 128, 32>}, {pipeline_mode = #tpu.pipeline_mode<synchronous>, transform_indices = @transform_8, window_bounds = array<i64: 128, 32>}, {pipeline_mode = #tpu.pipeline_mode<synchronous>, transform_indices = @transform_9, window_bounds = array<i64: 32, 64>}, {pipeline_mode = #tpu.pipeline_mode<synchronous>, transform_indices = @transform_10, window_bounds = array<i64: 64, 32>}, {pipeline_mode = #tpu.pipeline_mode<synchronous>, transform_indices = @transform_11, window_bounds = array<i64: 9, 64>}, {transform_indices = @transform_12, window_bounds = array<i64: 8, 32>}]} {
    %c0 = arith.constant 0 : index
    %c0_0 = arith.constant 0 : index
    %0 = vector.load %arg1[%c0, %c0_0] : memref<8x32xf32, #tpu.memory_space<vmem>>, vector<8x32xf32>
    %c0_1 = arith.constant 0 : index
    %c0_2 = arith.constant 0 : index
    %1 = vector.load %arg12[%c0_1, %c0_2] : memref<9x64xf32, #tpu.memory_space<vmem>>, vector<9x64xf32>
    %2 = vector.extract_strided_slice %1 {offsets = [0, 0], sizes = [1, 16], strides = [1, 1]} : vector<9x64xf32> to vector<1x16xf32>
    %3 = vector.extract_strided_slice %1 {offsets = [1, 0], sizes = [1, 64], strides = [1, 1]} : vector<9x64xf32> to vector<1x64xf32>
    %4 = vector.extract_strided_slice %1 {offsets = [2, 0], sizes = [1, 32], strides = [1, 1]} : vector<9x64xf32> to vector<1x32xf32>
    %5 = vector.extract_strided_slice %1 {offsets = [3, 0], sizes = [6, 32], strides = [1, 1]} : vector<9x64xf32> to vector<6x32xf32>
    %c0_3 = arith.constant 0 : index
    %c0_4 = arith.constant 0 : index
    %6 = vector.load %arg5[%c0_3, %c0_4] : memref<128x16xf32, #tpu.memory_space<vmem>>, vector<128x16xf32>
    %c0_5 = arith.constant 0 : index
    %c0_6 = arith.constant 0 : index
    %7 = vector.load %arg6[%c0_5, %c0_6] : memref<16x16xf32, #tpu.memory_space<vmem>>, vector<16x16xf32>
    %c0_7 = arith.constant 0 : index
    %c0_8 = arith.constant 0 : index
    %8 = vector.load %arg7[%c0_7, %c0_8] : memref<16x128xf32, #tpu.memory_space<vmem>>, vector<16x128xf32>
    %c0_9 = arith.constant 0 : index
    %c0_10 = arith.constant 0 : index
    %9 = vector.load %arg3[%c0_9, %c0_10] : memref<32x32xf32, #tpu.memory_space<vmem>>, vector<32x32xf32>
    %cst = arith.constant dense<0.000000e+00> : vector<8x32xf32>
    %10 = tpu.matmul %0, %9, %cst {dimension_numbers = #tpu.dot_dimension_numbers<[1], [0], [0], [1], [0, 0, 1, 1], [], []>} : vector<8x32xf32>, vector<32x32xf32>, vector<8x32xf32> -> vector<8x32xf32>
    %11 = tpu.concatenate %10, %10, %10, %10 in 1 : vector<8x32xf32>, vector<8x32xf32>, vector<8x32xf32>, vector<8x32xf32> -> vector<8x128xf32>
    %12 = vector.extract_strided_slice %10 {offsets = [0, 0], sizes = [8, 8], strides = [1, 1]} : vector<8x32xf32> to vector<8x8xf32>
    %13 = vector.extract_strided_slice %10 {offsets = [0, 8], sizes = [8, 8], strides = [1, 1]} : vector<8x32xf32> to vector<8x8xf32>
    %14 = vector.extract_strided_slice %10 {offsets = [0, 16], sizes = [8, 8], strides = [1, 1]} : vector<8x32xf32> to vector<8x8xf32>
    %15 = vector.extract_strided_slice %10 {offsets = [0, 24], sizes = [8, 8], strides = [1, 1]} : vector<8x32xf32> to vector<8x8xf32>
    %16 = tpu.concatenate %12, %12, %12, %12, %13, %13, %13, %13, %14, %14, %14, %14, %15, %15, %15, %15 in 1 : vector<8x8xf32>, vector<8x8xf32>, vector<8x8xf32>, vector<8x8xf32>, vector<8x8xf32>, vector<8x8xf32>, vector<8x8xf32>, vector<8x8xf32>, vector<8x8xf32>, vector<8x8xf32>, vector<8x8xf32>, vector<8x8xf32>, vector<8x8xf32>, vector<8x8xf32>, vector<8x8xf32>, vector<8x8xf32> -> vector<8x128xf32>
    %c0_11 = arith.constant 0 : index
    %c0_12 = arith.constant 0 : index
    %17 = vector.load %arg8[%c0_11, %c0_12] : memref<128x32xf32, #tpu.memory_space<vmem>>, vector<128x32xf32>
    %18 = arith.mulf %16, %11 : vector<8x128xf32>
    %cst_13 = arith.constant dense<0.000000e+00> : vector<8x16xf32>
    %19 = tpu.matmul %18, %6, %cst_13 {dimension_numbers = #tpu.dot_dimension_numbers<[1], [0], [0], [1], [0, 0, 1, 1], [], []>} : vector<8x128xf32>, vector<128x16xf32>, vector<8x16xf32> -> vector<8x16xf32>
    %20 = vector.broadcast %2 : vector<1x16xf32> to vector<8x16xf32>
    %21 = arith.mulf %19, %20 : vector<8x16xf32>
    %cst_14 = arith.constant dense<0xFF800000> : vector<8xf32>
    %22 = vector.multi_reduction <maximumf>, %21, %cst_14 [1] : vector<8x16xf32> to vector<8xf32>
    %23 = vector.shape_cast %22 : vector<8xf32> to vector<8x1xf32>
    %24 = vector.broadcast %23 : vector<8x1xf32> to vector<8x16xf32>
    %25 = arith.subf %21, %24 : vector<8x16xf32>
    %26 = math.exp %25 : vector<8x16xf32>
    %cst_15 = arith.constant dense<0.000000e+00> : vector<8x16xf32>
    %27 = tpu.matmul %26, %7, %cst_15 {dimension_numbers = #tpu.dot_dimension_numbers<[1], [0], [0], [1], [0, 0, 1, 1], [], []>} : vector<8x16xf32>, vector<16x16xf32>, vector<8x16xf32> -> vector<8x16xf32>
    %28 = tpu.reciprocal %27 {approx = true} : vector<8x16xf32> -> vector<8x16xf32>
    %29 = arith.mulf %27, %28 : vector<8x16xf32>
    %cst_16 = arith.constant 2.000000e+00 : f32
    %30 = vector.broadcast %cst_16 : f32 to vector<8x16xf32>
    %31 = arith.subf %30, %29 : vector<8x16xf32>
    %32 = arith.mulf %28, %31 : vector<8x16xf32>
    %33 = arith.mulf %26, %32 : vector<8x16xf32>
    %cst_17 = arith.constant dense<0.000000e+00> : vector<8x128xf32>
    %34 = tpu.matmul %33, %8, %cst_17 {dimension_numbers = #tpu.dot_dimension_numbers<[1], [0], [0], [1], [0, 0, 1, 1], [], []>} : vector<8x16xf32>, vector<16x128xf32>, vector<8x128xf32> -> vector<8x128xf32>
    %35 = arith.mulf %34, %11 : vector<8x128xf32>
    %cst_18 = arith.constant dense<0.000000e+00> : vector<8x32xf32>
    %36 = tpu.matmul %35, %17, %cst_18 {dimension_numbers = #tpu.dot_dimension_numbers<[1], [0], [0], [1], [0, 0, 1, 1], [], []>} : vector<8x128xf32>, vector<128x32xf32>, vector<8x32xf32> -> vector<8x32xf32>
    %37 = arith.addf %0, %36 : vector<8x32xf32>
    %38 = vector.extract_strided_slice %5 {offsets = [0, 0], sizes = [1, 32], strides = [1, 1]} : vector<6x32xf32> to vector<1x32xf32>
    %39 = vector.extract_strided_slice %5 {offsets = [1, 0], sizes = [1, 32], strides = [1, 1]} : vector<6x32xf32> to vector<1x32xf32>
    %cst_19 = arith.constant dense<0.000000e+00> : vector<8xf32>
    %40 = vector.multi_reduction <add>, %37, %cst_19 [1] : vector<8x32xf32> to vector<8xf32>
    %41 = vector.shape_cast %40 : vector<8xf32> to vector<8x1xf32>
    %cst_20 = arith.constant 3.200000e+01 : f32
    %42 = vector.broadcast %cst_20 : f32 to vector<8x1xf32>
    %43 = arith.divf %41, %42 : vector<8x1xf32>
    %44 = vector.broadcast %43 : vector<8x1xf32> to vector<8x32xf32>
    %45 = arith.subf %37, %44 : vector<8x32xf32>
    %46 = arith.mulf %45, %45 : vector<8x32xf32>
    %cst_21 = arith.constant dense<0.000000e+00> : vector<8xf32>
    %47 = vector.multi_reduction <add>, %46, %cst_21 [1] : vector<8x32xf32> to vector<8xf32>
    %48 = vector.shape_cast %47 : vector<8xf32> to vector<8x1xf32>
    %cst_22 = arith.constant 3.200000e+01 : f32
    %49 = vector.broadcast %cst_22 : f32 to vector<8x1xf32>
    %50 = arith.divf %48, %49 : vector<8x1xf32>
    %cst_23 = arith.constant 9.99999974E-6 : f32
    %51 = vector.broadcast %cst_23 : f32 to vector<8x1xf32>
    %52 = arith.addf %50, %51 : vector<8x1xf32>
    %53 = math.rsqrt %52 : vector<8x1xf32>
    %54 = vector.broadcast %53 : vector<8x1xf32> to vector<8x32xf32>
    %55 = arith.mulf %45, %54 : vector<8x32xf32>
    %56 = vector.broadcast %38 : vector<1x32xf32> to vector<8x32xf32>
    %57 = arith.mulf %55, %56 : vector<8x32xf32>
    %58 = vector.broadcast %39 : vector<1x32xf32> to vector<8x32xf32>
    %59 = arith.addf %57, %58 : vector<8x32xf32>
    %c0_24 = arith.constant 0 : index
    %c0_25 = arith.constant 0 : index
    %60 = vector.load %arg2[%c0_24, %c0_25] : memref<8x32xf32, #tpu.memory_space<vmem>>, vector<8x32xf32>
    %c0_26 = arith.constant 0 : index
    %c0_27 = arith.constant 0 : index
    %61 = vector.load %arg4[%c0_26, %c0_27] : memref<32x32xf32, #tpu.memory_space<vmem>>, vector<32x32xf32>
    %cst_28 = arith.constant dense<0.000000e+00> : vector<8x32xf32>
    %62 = tpu.matmul %60, %61, %cst_28 {dimension_numbers = #tpu.dot_dimension_numbers<[1], [0], [0], [1], [0, 0, 1, 1], [], []>} : vector<8x32xf32>, vector<32x32xf32>, vector<8x32xf32> -> vector<8x32xf32>
    %c0_29 = arith.constant 0 : index
    %c0_30 = arith.constant 0 : index
    %63 = vector.load %arg4[%c0_29, %c0_30] : memref<32x32xf32, #tpu.memory_space<vmem>>, vector<32x32xf32>
    %cst_31 = arith.constant dense<0.000000e+00> : vector<8x32xf32>
    %64 = tpu.matmul %0, %63, %cst_31 {dimension_numbers = #tpu.dot_dimension_numbers<[1], [0], [0], [1], [0, 0, 1, 1], [], []>} : vector<8x32xf32>, vector<32x32xf32>, vector<8x32xf32> -> vector<8x32xf32>
    %65 = vector.extract_strided_slice %62 {offsets = [0, 0], sizes = [8, 8], strides = [1, 1]} : vector<8x32xf32> to vector<8x8xf32>
    %66 = vector.extract_strided_slice %62 {offsets = [0, 8], sizes = [8, 8], strides = [1, 1]} : vector<8x32xf32> to vector<8x8xf32>
    %67 = vector.extract_strided_slice %62 {offsets = [0, 16], sizes = [8, 8], strides = [1, 1]} : vector<8x32xf32> to vector<8x8xf32>
    %68 = vector.extract_strided_slice %62 {offsets = [0, 24], sizes = [8, 8], strides = [1, 1]} : vector<8x32xf32> to vector<8x8xf32>
    %69 = tpu.concatenate %65, %65, %65, %65, %66, %66, %66, %66, %67, %67, %67, %67, %68, %68, %68, %68 in 1 : vector<8x8xf32>, vector<8x8xf32>, vector<8x8xf32>, vector<8x8xf32>, vector<8x8xf32>, vector<8x8xf32>, vector<8x8xf32>, vector<8x8xf32>, vector<8x8xf32>, vector<8x8xf32>, vector<8x8xf32>, vector<8x8xf32>, vector<8x8xf32>, vector<8x8xf32>, vector<8x8xf32>, vector<8x8xf32> -> vector<8x128xf32>
    %70 = tpu.concatenate %62, %62, %62, %62 in 1 : vector<8x32xf32>, vector<8x32xf32>, vector<8x32xf32>, vector<8x32xf32> -> vector<8x128xf32>
    %71 = tpu.concatenate %64, %64, %64, %64 in 1 : vector<8x32xf32>, vector<8x32xf32>, vector<8x32xf32>, vector<8x32xf32> -> vector<8x128xf32>
    %c0_32 = arith.constant 0 : index
    %c0_33 = arith.constant 0 : index
    %72 = vector.load %arg9[%c0_32, %c0_33] : memref<128x32xf32, #tpu.memory_space<vmem>>, vector<128x32xf32>
    %73 = arith.mulf %69, %70 : vector<8x128xf32>
    %cst_34 = arith.constant dense<0.000000e+00> : vector<8x16xf32>
    %74 = tpu.matmul %73, %6, %cst_34 {dimension_numbers = #tpu.dot_dimension_numbers<[1], [0], [0], [1], [0, 0, 1, 1], [], []>} : vector<8x128xf32>, vector<128x16xf32>, vector<8x16xf32> -> vector<8x16xf32>
    %cst_35 = arith.constant dense<0xFF800000> : vector<8xf32>
    %75 = vector.multi_reduction <maximumf>, %74, %cst_35 [1] : vector<8x16xf32> to vector<8xf32>
    %76 = vector.shape_cast %75 : vector<8xf32> to vector<8x1xf32>
    %77 = vector.broadcast %76 : vector<8x1xf32> to vector<8x16xf32>
    %78 = arith.subf %74, %77 : vector<8x16xf32>
    %79 = math.exp %78 : vector<8x16xf32>
    %cst_36 = arith.constant dense<0.000000e+00> : vector<8x16xf32>
    %80 = tpu.matmul %79, %7, %cst_36 {dimension_numbers = #tpu.dot_dimension_numbers<[1], [0], [0], [1], [0, 0, 1, 1], [], []>} : vector<8x16xf32>, vector<16x16xf32>, vector<8x16xf32> -> vector<8x16xf32>
    %81 = tpu.reciprocal %80 {approx = true} : vector<8x16xf32> -> vector<8x16xf32>
    %82 = arith.mulf %80, %81 : vector<8x16xf32>
    %cst_37 = arith.constant 2.000000e+00 : f32
    %83 = vector.broadcast %cst_37 : f32 to vector<8x16xf32>
    %84 = arith.subf %83, %82 : vector<8x16xf32>
    %85 = arith.mulf %81, %84 : vector<8x16xf32>
    %86 = arith.mulf %79, %85 : vector<8x16xf32>
    %cst_38 = arith.constant dense<0.000000e+00> : vector<8x128xf32>
    %87 = tpu.matmul %86, %8, %cst_38 {dimension_numbers = #tpu.dot_dimension_numbers<[1], [0], [0], [1], [0, 0, 1, 1], [], []>} : vector<8x16xf32>, vector<16x128xf32>, vector<8x128xf32> -> vector<8x128xf32>
    %88 = arith.mulf %87, %71 : vector<8x128xf32>
    %cst_39 = arith.constant dense<0.000000e+00> : vector<8x32xf32>
    %89 = tpu.matmul %88, %72, %cst_39 {dimension_numbers = #tpu.dot_dimension_numbers<[1], [0], [0], [1], [0, 0, 1, 1], [], []>} : vector<8x128xf32>, vector<128x32xf32>, vector<8x32xf32> -> vector<8x32xf32>
    %90 = arith.addf %59, %89 : vector<8x32xf32>
    %91 = vector.extract_strided_slice %5 {offsets = [2, 0], sizes = [1, 32], strides = [1, 1]} : vector<6x32xf32> to vector<1x32xf32>
    %92 = vector.extract_strided_slice %5 {offsets = [3, 0], sizes = [1, 32], strides = [1, 1]} : vector<6x32xf32> to vector<1x32xf32>
    %cst_40 = arith.constant dense<0.000000e+00> : vector<8xf32>
    %93 = vector.multi_reduction <add>, %90, %cst_40 [1] : vector<8x32xf32> to vector<8xf32>
    %94 = vector.shape_cast %93 : vector<8xf32> to vector<8x1xf32>
    %cst_41 = arith.constant 3.200000e+01 : f32
    %95 = vector.broadcast %cst_41 : f32 to vector<8x1xf32>
    %96 = arith.divf %94, %95 : vector<8x1xf32>
    %97 = vector.broadcast %96 : vector<8x1xf32> to vector<8x32xf32>
    %98 = arith.subf %90, %97 : vector<8x32xf32>
    %99 = arith.mulf %98, %98 : vector<8x32xf32>
    %cst_42 = arith.constant dense<0.000000e+00> : vector<8xf32>
    %100 = vector.multi_reduction <add>, %99, %cst_42 [1] : vector<8x32xf32> to vector<8xf32>
    %101 = vector.shape_cast %100 : vector<8xf32> to vector<8x1xf32>
    %cst_43 = arith.constant 3.200000e+01 : f32
    %102 = vector.broadcast %cst_43 : f32 to vector<8x1xf32>
    %103 = arith.divf %101, %102 : vector<8x1xf32>
    %cst_44 = arith.constant 9.99999974E-6 : f32
    %104 = vector.broadcast %cst_44 : f32 to vector<8x1xf32>
    %105 = arith.addf %103, %104 : vector<8x1xf32>
    %106 = math.rsqrt %105 : vector<8x1xf32>
    %107 = vector.broadcast %106 : vector<8x1xf32> to vector<8x32xf32>
    %108 = arith.mulf %98, %107 : vector<8x32xf32>
    %109 = vector.broadcast %91 : vector<1x32xf32> to vector<8x32xf32>
    %110 = arith.mulf %108, %109 : vector<8x32xf32>
    %111 = vector.broadcast %92 : vector<1x32xf32> to vector<8x32xf32>
    %112 = arith.addf %110, %111 : vector<8x32xf32>
    %c0_45 = arith.constant 0 : index
    %c0_46 = arith.constant 0 : index
    %113 = vector.load %arg10[%c0_45, %c0_46] : memref<32x64xf32, #tpu.memory_space<vmem>>, vector<32x64xf32>
    %cst_47 = arith.constant dense<0.000000e+00> : vector<8x64xf32>
    %114 = tpu.matmul %112, %113, %cst_47 {dimension_numbers = #tpu.dot_dimension_numbers<[1], [0], [0], [1], [0, 0, 1, 1], [], []>} : vector<8x32xf32>, vector<32x64xf32>, vector<8x64xf32> -> vector<8x64xf32>
    %115 = vector.broadcast %3 : vector<1x64xf32> to vector<8x64xf32>
    %116 = arith.addf %114, %115 : vector<8x64xf32>
    %cst_48 = arith.constant 0.000000e+00 : f32
    %117 = vector.broadcast %cst_48 : f32 to vector<8x64xf32>
    %118 = arith.maximumf %116, %117 : vector<8x64xf32>
    %c0_49 = arith.constant 0 : index
    %c0_50 = arith.constant 0 : index
    %119 = vector.load %arg11[%c0_49, %c0_50] : memref<64x32xf32, #tpu.memory_space<vmem>>, vector<64x32xf32>
    %cst_51 = arith.constant dense<0.000000e+00> : vector<8x32xf32>
    %120 = tpu.matmul %118, %119, %cst_51 {dimension_numbers = #tpu.dot_dimension_numbers<[1], [0], [0], [1], [0, 0, 1, 1], [], []>} : vector<8x64xf32>, vector<64x32xf32>, vector<8x32xf32> -> vector<8x32xf32>
    %121 = vector.broadcast %4 : vector<1x32xf32> to vector<8x32xf32>
    %122 = arith.addf %120, %121 : vector<8x32xf32>
    %123 = arith.addf %112, %122 : vector<8x32xf32>
    %124 = vector.extract_strided_slice %5 {offsets = [4, 0], sizes = [1, 32], strides = [1, 1]} : vector<6x32xf32> to vector<1x32xf32>
    %125 = vector.extract_strided_slice %5 {offsets = [5, 0], sizes = [1, 32], strides = [1, 1]} : vector<6x32xf32> to vector<1x32xf32>
    %cst_52 = arith.constant dense<0.000000e+00> : vector<8xf32>
    %126 = vector.multi_reduction <add>, %123, %cst_52 [1] : vector<8x32xf32> to vector<8xf32>
    %127 = vector.shape_cast %126 : vector<8xf32> to vector<8x1xf32>
    %cst_53 = arith.constant 3.200000e+01 : f32
    %128 = vector.broadcast %cst_53 : f32 to vector<8x1xf32>
    %129 = arith.divf %127, %128 : vector<8x1xf32>
    %130 = vector.broadcast %129 : vector<8x1xf32> to vector<8x32xf32>
    %131 = arith.subf %123, %130 : vector<8x32xf32>
    %132 = arith.mulf %131, %131 : vector<8x32xf32>
    %cst_54 = arith.constant dense<0.000000e+00> : vector<8xf32>
    %133 = vector.multi_reduction <add>, %132, %cst_54 [1] : vector<8x32xf32> to vector<8xf32>
    %134 = vector.shape_cast %133 : vector<8xf32> to vector<8x1xf32>
    %cst_55 = arith.constant 3.200000e+01 : f32
    %135 = vector.broadcast %cst_55 : f32 to vector<8x1xf32>
    %136 = arith.divf %134, %135 : vector<8x1xf32>
    %cst_56 = arith.constant 9.99999974E-6 : f32
    %137 = vector.broadcast %cst_56 : f32 to vector<8x1xf32>
    %138 = arith.addf %136, %137 : vector<8x1xf32>
    %139 = math.rsqrt %138 : vector<8x1xf32>
    %140 = vector.broadcast %139 : vector<8x1xf32> to vector<8x32xf32>
    %141 = arith.mulf %131, %140 : vector<8x32xf32>
    %142 = vector.broadcast %124 : vector<1x32xf32> to vector<8x32xf32>
    %143 = arith.mulf %141, %142 : vector<8x32xf32>
    %144 = vector.broadcast %125 : vector<1x32xf32> to vector<8x32xf32>
    %145 = arith.addf %143, %144 : vector<8x32xf32>
    %c0_57 = arith.constant 0 : index
    %c0_58 = arith.constant 0 : index
    %146 = vector.load %arg13[%c0_57, %c0_58] : memref<8x32xf32, #tpu.memory_space<vmem>>, vector<8x32xf32>
    tpu.vector_store %arg13[%c0_57, %c0_58], %145 {strides = array<i32>} : memref<8x32xf32, #tpu.memory_space<vmem>>, vector<8x32xf32>,
    return
  }
  func.func @transform_0(%arg0: i32) -> (i32, i32) {
    %c0_i32 = arith.constant 0 : i32
    %c0_i32_0 = arith.constant 0 : i32
    return %arg0, %c0_i32 : i32, i32
  }
  func.func @transform_1(%arg0: i32) -> (i32, i32) {
    %c0_i32 = arith.constant 0 : i32
    %c0_i32_0 = arith.constant 0 : i32
    return %arg0, %c0_i32 : i32, i32
  }
  func.func @transform_2(%arg0: i32) -> (i32, i32) {
    %c0_i32 = arith.constant 0 : i32
    %c0_i32_0 = arith.constant 0 : i32
    %c0_i32_1 = arith.constant 0 : i32
    return %c0_i32, %c0_i32_0 : i32, i32
  }
  func.func @transform_3(%arg0: i32) -> (i32, i32) {
    %c0_i32 = arith.constant 0 : i32
    %c0_i32_0 = arith.constant 0 : i32
    %c0_i32_1 = arith.constant 0 : i32
    return %c0_i32, %c0_i32_0 : i32, i32
  }
  func.func @transform_4(%arg0: i32) -> (i32, i32) {
    %c0_i32 = arith.constant 0 : i32
    %c0_i32_0 = arith.constant 0 : i32
    %c0_i32_1 = arith.constant 0 : i32
    return %c0_i32, %c0_i32_0 : i32, i32
  }
  func.func @transform_5(%arg0: i32) -> (i32, i32) {
    %c0_i32 = arith.constant 0 : i32
    %c0_i32_0 = arith.constant 0 : i32
    %c0_i32_1 = arith.constant 0 : i32
    return %c0_i32, %c0_i32_0 : i32, i32
  }
  func.func @transform_6(%arg0: i32) -> (i32, i32) {
    %c0_i32 = arith.constant 0 : i32
    %c0_i32_0 = arith.constant 0 : i32
    %c0_i32_1 = arith.constant 0 : i32
    return %c0_i32, %c0_i32_0 : i32, i32
  }
  func.func @transform_7(%arg0: i32) -> (i32, i32) {
    %c0_i32 = arith.constant 0 : i32
    %c0_i32_0 = arith.constant 0 : i32
    %c0_i32_1 = arith.constant 0 : i32
    return %c0_i32, %c0_i32_0 : i32, i32
  }
  func.func @transform_8(%arg0: i32) -> (i32, i32) {
    %c0_i32 = arith.constant 0 : i32
    %c0_i32_0 = arith.constant 0 : i32
    %c0_i32_1 = arith.constant 0 : i32
    return %c0_i32, %c0_i32_0 : i32, i32
  }
  func.func @transform_9(%arg0: i32) -> (i32, i32) {
    %c0_i32 = arith.constant 0 : i32
    %c0_i32_0 = arith.constant 0 : i32
    %c0_i32_1 = arith.constant 0 : i32
    return %c0_i32, %c0_i32_0 : i32, i32
  }
  func.func @transform_10(%arg0: i32) -> (i32, i32) {
    %c0_i32 = arith.constant 0 : i32
    %c0_i32_0 = arith.constant 0 : i32
    %c0_i32_1 = arith.constant 0 : i32
    return %c0_i32, %c0_i32_0 : i32, i32
  }
  func.func @transform_11(%arg0: i32) -> (i32, i32) {
    %c0_i32 = arith.constant 0 : i32
    %c0_i32_0 = arith.constant 0 : i32
    %c0_i32_1 = arith.constant 0 : i32
    return %c0_i32, %c0_i32_0 : i32, i32
  }
  func.func @transform_12(%arg0: i32) -> (i32, i32) {
    %c0_i32 = arith.constant 0 : i32
    %c0_i32_0 = arith.constant 0 : i32
    return %arg0, %c0_i32 : i32, i32
  }
}

</mosaic_0001>

<llo_original>
// kernel: tpu_custom_call.1
$region0: #{tpu_custom_call.1}
  #allocation0 [shape = 'u32[]', space=smem, size = 0x4, offset = 0x4, fixed_abs, tag = 'smem constant byte address 0x4 - core index']
  #allocation1 [shape = 'u32[72,128]{1,0:T(1,128)}', space=vmem, size = 0x9000, scoped, tag = 'internal scratch']
  %s0 = inlined_call_operand.vmem [shape: f32[16,32], index: 0, kind: input, shape index: {}]
  %s1 = inlined_call_operand.vmem [shape: f32[16,32], index: 1, kind: input, shape index: {}]
  %s2 = inlined_call_operand.vmem [shape: f32[32,32], index: 2, kind: input, shape index: {}]
  %s3 = inlined_call_operand.vmem [shape: f32[32,32], index: 3, kind: input, shape index: {}]
  %s4 = inlined_call_operand.vmem [shape: f32[128,16], index: 4, kind: input, shape index: {}]
  %s5 = inlined_call_operand.vmem [shape: f32[16,16], index: 5, kind: input, shape index: {}]
  %s6 = inlined_call_operand.vmem [shape: f32[16,128], index: 6, kind: input, shape index: {}]
  %s7 = inlined_call_operand.vmem [shape: f32[128,32], index: 7, kind: input, shape index: {}]
  %s8 = inlined_call_operand.vmem [shape: f32[128,32], index: 8, kind: input, shape index: {}]
  %s9 = inlined_call_operand.vmem [shape: f32[32,64], index: 9, kind: input, shape index: {}]
  %s10 = inlined_call_operand.vmem [shape: f32[64,32], index: 10, kind: input, shape index: {}]
  %s11 = inlined_call_operand.vmem [shape: f32[9,64], index: 11, kind: input, shape index: {}]
  %s12 = inlined_call_operand.hbm [shape: f32[16,32], index: 12, kind: output, shape index: {}]
  %s13 = sld [smem:[#allocation0]]
  $region81: #{tpu_custom_call.1} parent=0
    _
  %s15 = ssub.s32 1, %s13
  %s16 = scalar_select 0, %s15, %s13
  $region1: #{tpu_custom_call.1} parent=0
    #allocation2 [shape = 'u8[8192]{0}', space=vmem, size = 0x2000, scoped, tag = 'output window, operand 0']
    #allocation3 [shape = 's32[2]{0}', space=sflag, size = 0x8, scoped, tag = 'scoped memory for tpu_custom_call.1']
    %17 = vsyncpa [#allocation3], 0
    %s18 = scalar_lea.sflag [#allocation3], 1
    %19 = vsyncpa %s18, 0
    loop: start=0, step=1, limit=4
    $region2: #{tpu_custom_call.1} parent=1 // loop_pre_header
      _
    $region3: #{tpu_custom_call.1} parent=1 // loop_header
      %s21 = sphi 0, %s25
      %p22 = scmp.ge.s32.totalorder %s21, 4
      %s31 = sphi 0, %s33
      %s34 = sphi 0, %s31
      %s35 = sphi 0, %s34
      %s51 = sphi 0, %s35
      %s57 = sphi 0, %s59
      %s60 = sphi 0, %s57
      %s61 = sphi 0, %s60
      %s77 = sphi 0, %s61
      %s81 = sphi 0, %s81
      %s83 = sphi 0, %s81
      %s84 = sphi 0, %s83
      %s98 = sphi 0, %s84
      %s102 = sphi 0, %s102
      %s104 = sphi 0, %s102
      %s105 = sphi 0, %s104
      %s119 = sphi 0, %s105
      %s123 = sphi 0, %s123
      %s125 = sphi 0, %s123
      %s126 = sphi 0, %s125
      %s140 = sphi 0, %s126
      %s144 = sphi 0, %s144
      %s146 = sphi 0, %s144
      %s147 = sphi 0, %s146
      %s161 = sphi 0, %s147
      %s165 = sphi 0, %s165
      %s167 = sphi 0, %s165
      %s168 = sphi 0, %s167
      %s182 = sphi 0, %s168
      %s186 = sphi 0, %s186
      %s188 = sphi 0, %s186
      %s189 = sphi 0, %s188
      %s203 = sphi 0, %s189
      %s207 = sphi 0, %s207
      %s209 = sphi 0, %s207
      %s210 = sphi 0, %s209
      %s224 = sphi 0, %s210
      %s228 = sphi 0, %s228
      %s230 = sphi 0, %s228
      %s231 = sphi 0, %s230
      %s245 = sphi 0, %s231
      %s249 = sphi 0, %s249
      %s251 = sphi 0, %s249
      %s252 = sphi 0, %s251
      %s266 = sphi 0, %s252
      %s270 = sphi 0, %s270
      %s272 = sphi 0, %s270
      %s273 = sphi 0, %s272
      %s287 = sphi 0, %s273
      %s293 = sphi 0, %s295
      %s296 = sphi 0, %s293
      %s297 = sphi 0, %s296
      %s313 = sphi 0, %s297
    $region4: #{tpu_custom_call.1} parent=1 // loop_header_branch
      %24 = sbr.rel (%p22) target = $region8
    $region5: #{tpu_custom_call.1} parent=1 // loop_body
      %s26 = ssub.s32 %s21, 1
      %s27 = ssub.s32 %s21, 2
      %s28 = sadd.s32 %s21, 1
      %s29 = ssub.s32 %s21, %s28
      %p30 = scmp.eq.s32.totalorder %s29, 0
      %s32 = sadd.s32 %s31, 1
      %s33 = scalar_select %p30, %s31, %s32
      %p36 = pneg %p30
      %p37 = scmp.eq.s32.totalorder %s21, 1
      %p38 = por %p36, %p37
      %p39 = scmp.ne.s32.totalorder %s31, %s34
      %p40 = scmp.eq.s32.totalorder %s21, 0
      %p41 = por %p39, %p40
      %p42 = scmp.ne.s32.totalorder %s31, %s34
      %p43 = scmp.eq.s32.totalorder %s26, 1
      %p44 = por %p42, %p43
      %p45 = scmp.ne.s32.totalorder %s34, %s35
      %p46 = scmp.eq.s32.totalorder %s26, 0
      %p47 = por %p45, %p46
      %p48 = scmp.ne.s32.totalorder %s34, %s35
      %p49 = scmp.eq.s32.totalorder %s27, 1
      %p50 = por %p48, %p49
      %p52 = scmp.ne.s32.totalorder %s35, %s51
      %p53 = scmp.eq.s32.totalorder %s27, 0
      %p54 = por %p52, %p53
      %s55 = ssub.s32 %s21, %s28
      %p56 = scmp.eq.s32.totalorder %s55, 0
      %s58 = sadd.s32 %s57, 1
      %s59 = scalar_select %p56, %s57, %s58
      %p62 = pneg %p56
      %p63 = scmp.eq.s32.totalorder %s21, 1
      %p64 = por %p62, %p63
      %p65 = scmp.ne.s32.totalorder %s57, %s60
      %p66 = scmp.eq.s32.totalorder %s21, 0
      %p67 = por %p65, %p66
      %p68 = scmp.ne.s32.totalorder %s57, %s60
      %p69 = scmp.eq.s32.totalorder %s26, 1
      %p70 = por %p68, %p69
      %p71 = scmp.ne.s32.totalorder %s60, %s61
      %p72 = scmp.eq.s32.totalorder %s26, 0
      %p73 = por %p71, %p72
      %p74 = scmp.ne.s32.totalorder %s60, %s61
      %p75 = scmp.eq.s32.totalorder %s27, 1
      %p76 = por %p74, %p75
      %p78 = scmp.ne.s32.totalorder %s61, %s77
      %p79 = scmp.eq.s32.totalorder %s27, 0
      %p80 = por %p78, %p79
      %s82 = sadd.s32 %s81, 1
      %p85 = scmp.eq.s32.totalorder %s21, 1
      %p86 = scmp.ne.s32.totalorder %s81, %s83
      %p87 = scmp.eq.s32.totalorder %s21, 0
      %p88 = por %p86, %p87
      %p89 = scmp.ne.s32.totalorder %s81, %s83
      %p90 = scmp.eq.s32.totalorder %s26, 1
      %p91 = por %p89, %p90
      %p92 = scmp.ne.s32.totalorder %s83, %s84
      %p93 = scmp.eq.s32.totalorder %s26, 0
      %p94 = por %p92, %p93
      %p95 = scmp.ne.s32.totalorder %s83, %s84
      %p96 = scmp.eq.s32.totalorder %s27, 1
      %p97 = por %p95, %p96
      %p99 = scmp.ne.s32.totalorder %s84, %s98
      %p100 = scmp.eq.s32.totalorder %s27, 0
      %p101 = por %p99, %p100
      %s103 = sadd.s32 %s102, 1
      %p106 = scmp.eq.s32.totalorder %s21, 1
      %p107 = scmp.ne.s32.totalorder %s102, %s104
      %p108 = scmp.eq.s32.totalorder %s21, 0
      %p109 = por %p107, %p108
      %p110 = scmp.ne.s32.totalorder %s102, %s104
      %p111 = scmp.eq.s32.totalorder %s26, 1
      %p112 = por %p110, %p111
      %p113 = scmp.ne.s32.totalorder %s104, %s105
      %p114 = scmp.eq.s32.totalorder %s26, 0
      %p115 = por %p113, %p114
      %p116 = scmp.ne.s32.totalorder %s104, %s105
      %p117 = scmp.eq.s32.totalorder %s27, 1
      %p118 = por %p116, %p117
      %p120 = scmp.ne.s32.totalorder %s105, %s119
      %p121 = scmp.eq.s32.totalorder %s27, 0
      %p122 = por %p120, %p121
      %s124 = sadd.s32 %s123, 1
      %p127 = scmp.eq.s32.totalorder %s21, 1
      %p128 = scmp.ne.s32.totalorder %s123, %s125
      %p129 = scmp.eq.s32.totalorder %s21, 0
      %p130 = por %p128, %p129
      %p131 = scmp.ne.s32.totalorder %s123, %s125
      %p132 = scmp.eq.s32.totalorder %s26, 1
      %p133 = por %p131, %p132
      %p134 = scmp.ne.s32.totalorder %s125, %s126
      %p135 = scmp.eq.s32.totalorder %s26, 0
      %p136 = por %p134, %p135
      %p137 = scmp.ne.s32.totalorder %s125, %s126
      %p138 = scmp.eq.s32.totalorder %s27, 1
      %p139 = por %p137, %p138
      %p141 = scmp.ne.s32.totalorder %s126, %s140
      %p142 = scmp.eq.s32.totalorder %s27, 0
      %p143 = por %p141, %p142
      %s145 = sadd.s32 %s144, 1
      %p148 = scmp.eq.s32.totalorder %s21, 1
      %p149 = scmp.ne.s32.totalorder %s144, %s146
      %p150 = scmp.eq.s32.totalorder %s21, 0
      %p151 = por %p149, %p150
      %p152 = scmp.ne.s32.totalorder %s144, %s146
      %p153 = scmp.eq.s32.totalorder %s26, 1
      %p154 = por %p152, %p153
      %p155 = scmp.ne.s32.totalorder %s146, %s147
      %p156 = scmp.eq.s32.totalorder %s26, 0
      %p157 = por %p155, %p156
      %p158 = scmp.ne.s32.totalorder %s146, %s147
      %p159 = scmp.eq.s32.totalorder %s27, 1
      %p160 = por %p158, %p159
      %p162 = scmp.ne.s32.totalorder %s147, %s161
      %p163 = scmp.eq.s32.totalorder %s27, 0
      %p164 = por %p162, %p163
      %s166 = sadd.s32 %s165, 1
      %p169 = scmp.eq.s32.totalorder %s21, 1
      %p170 = scmp.ne.s32.totalorder %s165, %s167
      %p171 = scmp.eq.s32.totalorder %s21, 0
      %p172 = por %p170, %p171
      %p173 = scmp.ne.s32.totalorder %s165, %s167
      %p174 = scmp.eq.s32.totalorder %s26, 1
      %p175 = por %p173, %p174
      %p176 = scmp.ne.s32.totalorder %s167, %s168
      %p177 = scmp.eq.s32.totalorder %s26, 0
      %p178 = por %p176, %p177
      %p179 = scmp.ne.s32.totalorder %s167, %s168
      %p180 = scmp.eq.s32.totalorder %s27, 1
      %p181 = por %p179, %p180
      %p183 = scmp.ne.s32.totalorder %s168, %s182
      %p184 = scmp.eq.s32.totalorder %s27, 0
      %p185 = por %p183, %p184
      %s187 = sadd.s32 %s186, 1
      %p190 = scmp.eq.s32.totalorder %s21, 1
      %p191 = scmp.ne.s32.totalorder %s186, %s188
      %p192 = scmp.eq.s32.totalorder %s21, 0
      %p193 = por %p191, %p192
      %p194 = scmp.ne.s32.totalorder %s186, %s188
      %p195 = scmp.eq.s32.totalorder %s26, 1
      %p196 = por %p194, %p195
      %p197 = scmp.ne.s32.totalorder %s188, %s189
      %p198 = scmp.eq.s32.totalorder %s26, 0
      %p199 = por %p197, %p198
      %p200 = scmp.ne.s32.totalorder %s188, %s189
      %p201 = scmp.eq.s32.totalorder %s27, 1
      %p202 = por %p200, %p201
      %p204 = scmp.ne.s32.totalorder %s189, %s203
      %p205 = scmp.eq.s32.totalorder %s27, 0
      %p206 = por %p204, %p205
      %s208 = sadd.s32 %s207, 1
      %p211 = scmp.eq.s32.totalorder %s21, 1
      %p212 = scmp.ne.s32.totalorder %s207, %s209
      %p213 = scmp.eq.s32.totalorder %s21, 0
      %p214 = por %p212, %p213
      %p215 = scmp.ne.s32.totalorder %s207, %s209
      %p216 = scmp.eq.s32.totalorder %s26, 1
      %p217 = por %p215, %p216
      %p218 = scmp.ne.s32.totalorder %s209, %s210
      %p219 = scmp.eq.s32.totalorder %s26, 0
      %p220 = por %p218, %p219
      %p221 = scmp.ne.s32.totalorder %s209, %s210
      %p222 = scmp.eq.s32.totalorder %s27, 1
      %p223 = por %p221, %p222
      %p225 = scmp.ne.s32.totalorder %s210, %s224
      %p226 = scmp.eq.s32.totalorder %s27, 0
      %p227 = por %p225, %p226
      %s229 = sadd.s32 %s228, 1
      %p232 = scmp.eq.s32.totalorder %s21, 1
      %p233 = scmp.ne.s32.totalorder %s228, %s230
      %p234 = scmp.eq.s32.totalorder %s21, 0
      %p235 = por %p233, %p234
      %p236 = scmp.ne.s32.totalorder %s228, %s230
      %p237 = scmp.eq.s32.totalorder %s26, 1
      %p238 = por %p236, %p237
      %p239 = scmp.ne.s32.totalorder %s230, %s231
      %p240 = scmp.eq.s32.totalorder %s26, 0
      %p241 = por %p239, %p240
      %p242 = scmp.ne.s32.totalorder %s230, %s231
      %p243 = scmp.eq.s32.totalorder %s27, 1
      %p244 = por %p242, %p243
      %p246 = scmp.ne.s32.totalorder %s231, %s245
      %p247 = scmp.eq.s32.totalorder %s27, 0
      %p248 = por %p246, %p247
      %s250 = sadd.s32 %s249, 1
      %p253 = scmp.eq.s32.totalorder %s21, 1
      %p254 = scmp.ne.s32.totalorder %s249, %s251
      %p255 = scmp.eq.s32.totalorder %s21, 0
      %p256 = por %p254, %p255
      %p257 = scmp.ne.s32.totalorder %s249, %s251
      %p258 = scmp.eq.s32.totalorder %s26, 1
      %p259 = por %p257, %p258
      %p260 = scmp.ne.s32.totalorder %s251, %s252
      %p261 = scmp.eq.s32.totalorder %s26, 0
      %p262 = por %p260, %p261
      %p263 = scmp.ne.s32.totalorder %s251, %s252
      %p264 = scmp.eq.s32.totalorder %s27, 1
      %p265 = por %p263, %p264
      %p267 = scmp.ne.s32.totalorder %s252, %s266
      %p268 = scmp.eq.s32.totalorder %s27, 0
      %p269 = por %p267, %p268
      %s271 = sadd.s32 %s270, 1
      %p274 = scmp.eq.s32.totalorder %s21, 1
      %p275 = scmp.ne.s32.totalorder %s270, %s272
      %p276 = scmp.eq.s32.totalorder %s21, 0
      %p277 = por %p275, %p276
      %p278 = scmp.ne.s32.totalorder %s270, %s272
      %p279 = scmp.eq.s32.totalorder %s26, 1
      %p280 = por %p278, %p279
      %p281 = scmp.ne.s32.totalorder %s272, %s273
      %p282 = scmp.eq.s32.totalorder %s26, 0
      %p283 = por %p281, %p282
      %p284 = scmp.ne.s32.totalorder %s272, %s273
      %p285 = scmp.eq.s32.totalorder %s27, 1
      %p286 = por %p284, %p285
      %p288 = scmp.ne.s32.totalorder %s273, %s287
      %p289 = scmp.eq.s32.totalorder %s27, 0
      %p290 = por %p288, %p289
      %s291 = ssub.s32 %s21, %s28
      %p292 = scmp.eq.s32.totalorder %s291, 0
      %s294 = sadd.s32 %s293, 1
      %s295 = scalar_select %p292, %s293, %s294
      %p298 = pneg %p292
      %p299 = scmp.eq.s32.totalorder %s21, 1
      %p300 = por %p298, %p299
      %p301 = scmp.ne.s32.totalorder %s293, %s296
      %p302 = scmp.eq.s32.totalorder %s21, 0
      %p303 = por %p301, %p302
      %p304 = scmp.ne.s32.totalorder %s293, %s296
      %p305 = scmp.eq.s32.totalorder %s26, 1
      %p306 = por %p304, %p305
      %p307 = scmp.ne.s32.totalorder %s296, %s297
      %p308 = scmp.eq.s32.totalorder %s26, 0
      %p309 = por %p307, %p308
      %p310 = scmp.ne.s32.totalorder %s296, %s297
      %p311 = scmp.eq.s32.totalorder %s27, 1
      %p312 = por %p310, %p311
      %p314 = scmp.ne.s32.totalorder %s297, %s313
      %p315 = scmp.eq.s32.totalorder %s27, 0
      %p316 = por %p314, %p315
      %p317 = scmp.le.s32.totalorder 1, %s21
      %p318 = scmp.lt.s32.totalorder %s21, 3
      %p319 = pnand %p317, %p318
      %p320 = pneg %p319
      // Predicated region
      $region9: #{tpu_custom_call.1} parent=5 // pred_check
        _
      $region10: #{tpu_custom_call.1} parent=5 // pred_check_branch
        %322 = sbr.rel (%p319) target = $region12
      $region11: #{tpu_custom_call.1} parent=5 // pred_region
        %s323 = ssub.s32 %s21, 1
        // Predicated region
        $region13: #{tpu_custom_call.1} parent=11 // pred_check
          %p324 = pneg %p94
        $region14: #{tpu_custom_call.1} parent=11 // pred_check_branch
          %326 = sbr.rel (%p324) target = $region16
        $region15: #{tpu_custom_call.1} parent=11 // pred_region
          _
        $region16: #{tpu_custom_call.1} parent=11 // pred_fallthru
          _
        // Predicated region
        $region17: #{tpu_custom_call.1} parent=11 // pred_check
          %p327 = pneg %p115
        $region18: #{tpu_custom_call.1} parent=11 // pred_check_branch
          %329 = sbr.rel (%p327) target = $region20
        $region19: #{tpu_custom_call.1} parent=11 // pred_region
          _
        $region20: #{tpu_custom_call.1} parent=11 // pred_fallthru
          _
        // Predicated region
        $region21: #{tpu_custom_call.1} parent=11 // pred_check
          %p330 = pneg %p136
        $region22: #{tpu_custom_call.1} parent=11 // pred_check_branch
          %332 = sbr.rel (%p330) target = $region24
        $region23: #{tpu_custom_call.1} parent=11 // pred_region
          _
        $region24: #{tpu_custom_call.1} parent=11 // pred_fallthru
          _
        // Predicated region
        $region25: #{tpu_custom_call.1} parent=11 // pred_check
          %p333 = pneg %p157
        $region26: #{tpu_custom_call.1} parent=11 // pred_check_branch
          %335 = sbr.rel (%p333) target = $region28
        $region27: #{tpu_custom_call.1} parent=11 // pred_region
          _
        $region28: #{tpu_custom_call.1} parent=11 // pred_fallthru
          _
        // Predicated region
        $region29: #{tpu_custom_call.1} parent=11 // pred_check
          %p336 = pneg %p178
        $region30: #{tpu_custom_call.1} parent=11 // pred_check_branch
          %338 = sbr.rel (%p336) target = $region32
        $region31: #{tpu_custom_call.1} parent=11 // pred_region
          _
        $region32: #{tpu_custom_call.1} parent=11 // pred_fallthru
          _
        // Predicated region
        $region33: #{tpu_custom_call.1} parent=11 // pred_check
          %p339 = pneg %p199
        $region34: #{tpu_custom_call.1} parent=11 // pred_check_branch
          %341 = sbr.rel (%p339) target = $region36
        $region35: #{tpu_custom_call.1} parent=11 // pred_region
          _
        $region36: #{tpu_custom_call.1} parent=11 // pred_fallthru
          _
        // Predicated region
        $region37: #{tpu_custom_call.1} parent=11 // pred_check
          %p342 = pneg %p220
        $region38: #{tpu_custom_call.1} parent=11 // pred_check_branch
          %344 = sbr.rel (%p342) target = $region40
        $region39: #{tpu_custom_call.1} parent=11 // pred_region
          _
        $region40: #{tpu_custom_call.1} parent=11 // pred_fallthru
          _
        // Predicated region
        $region41: #{tpu_custom_call.1} parent=11 // pred_check
          %p345 = pneg %p241
        $region42: #{tpu_custom_call.1} parent=11 // pred_check_branch
          %347 = sbr.rel (%p345) target = $region44
        $region43: #{tpu_custom_call.1} parent=11 // pred_region
          _
        $region44: #{tpu_custom_call.1} parent=11 // pred_fallthru
          _
        // Predicated region
        $region45: #{tpu_custom_call.1} parent=11 // pred_check
          %p348 = pneg %p262
        $region46: #{tpu_custom_call.1} parent=11 // pred_check_branch
          %350 = sbr.rel (%p348) target = $region48
        $region47: #{tpu_custom_call.1} parent=11 // pred_region
          _
        $region48: #{tpu_custom_call.1} parent=11 // pred_fallthru
          _
        // Predicated region
        $region49: #{tpu_custom_call.1} parent=11 // pred_check
          %p351 = pneg %p283
        $region50: #{tpu_custom_call.1} parent=11 // pred_check_branch
          %353 = sbr.rel (%p351) target = $region52
        $region51: #{tpu_custom_call.1} parent=11 // pred_region
          _
        $region52: #{tpu_custom_call.1} parent=11 // pred_fallthru
          _
      $region12: #{tpu_custom_call.1} parent=5 // pred_fallthru
        _
      %p354 = scmp.lt.s32.totalorder %s21, 2
      // Predicated region
      $region53: #{tpu_custom_call.1} parent=5 // pred_check
        %p355 = pneg %p354
      $region54: #{tpu_custom_call.1} parent=5 // pred_check_branch
        %357 = sbr.rel (%p355) target = $region56
      $region55: #{tpu_custom_call.1} parent=5 // pred_region
        // Predicated region
        $region57: #{tpu_custom_call.1} parent=55 // pred_check
          %p358 = pneg %p41
        $region58: #{tpu_custom_call.1} parent=55 // pred_check_branch
          %360 = sbr.rel (%p358) target = $region60
        $region59: #{tpu_custom_call.1} parent=55 // pred_region
          %p361 = scmp.lt.s32.totalorder %s21, 1
          %s362 = scalar_select %p361, %s21, 1
          %s363 = smul.addr %s362, 8
          %s364 = scalar_lea.vmem %s0, %s363
        $region60: #{tpu_custom_call.1} parent=55 // pred_fallthru
          _
        // Predicated region
        $region61: #{tpu_custom_call.1} parent=55 // pred_check
          %p365 = pneg %p67
        $region62: #{tpu_custom_call.1} parent=55 // pred_check_branch
          %367 = sbr.rel (%p365) target = $region64
        $region63: #{tpu_custom_call.1} parent=55 // pred_region
          %p368 = scmp.lt.s32.totalorder %s21, 1
          %s369 = scalar_select %p368, %s21, 1
          %s370 = smul.addr %s369, 8
          %s371 = scalar_lea.vmem %s1, %s370
        $region64: #{tpu_custom_call.1} parent=55 // pred_fallthru
          _
      $region56: #{tpu_custom_call.1} parent=5 // pred_fallthru
        _
      %p372 = scmp.le.s32.totalorder 1, %s21
      %p373 = scmp.lt.s32.totalorder %s21, 3
      %p374 = pnand %p372, %p373
      %p375 = pneg %p374
      // Predicated region
      $region65: #{tpu_custom_call.1} parent=5 // pred_check
        _
      $region66: #{tpu_custom_call.1} parent=5 // pred_check_branch
        %377 = sbr.rel (%p374) target = $region68
      $region67: #{tpu_custom_call.1} parent=5 // pred_region
        %s378 = ssub.s32 %s21, 1
        %p379 = scmp.lt.s32.totalorder %s26, 1
        %s380 = scalar_select %p379, %s26, 1
        %s381 = smul.addr %s380, 8
        %s382 = scalar_lea.vmem %s0, %s381
        %p383 = pneg %p47
        %p384 = pneg %p44
        %p385 = scmp.lt.s32.totalorder %s26, 1
        %s386 = scalar_select %p385, %s26, 1
        %s387 = smul.addr %s386, 8
        %s388 = scalar_lea.vmem %s1, %s387
        %p389 = pneg %p73
        %p390 = pneg %p70
        %p391 = pneg %p94
        %p392 = pneg %p91
        %p393 = pneg %p115
        %p394 = pneg %p112
        %p395 = pneg %p136
        %p396 = pneg %p133
        %p397 = pneg %p157
        %p398 = pneg %p154
        %p399 = pneg %p178
        %p400 = pneg %p175
        %p401 = pneg %p199
        %p402 = pneg %p196
        %p403 = pneg %p220
        %p404 = pneg %p217
        %p405 = pneg %p241
        %p406 = pneg %p238
        %p407 = pneg %p262
        %p408 = pneg %p259
        %p409 = pneg %p283
        %p410 = pneg %p280
        %p411 = pneg %p309
        %p412 = pneg %p306
        %s413 = sand.u32 %s296, 1
        %s414 = scalar_lea.sflag [#allocation3], %s413
        %s415 = sand.u32 %s296, 1
        %s416 = smul.addr %s415, 8
        %s417 = scalar_lea.vmem [#allocation2], %s416
        %p418 = scmp.lt.s32.totalorder %s26, 1
        %s419 = scalar_select %p418, %s26, 1
        %s420 = smul.addr %s419, 8
        %s421 = scalar_lea.vmem %s0, %s420
        %p422 = scmp.lt.s32.totalorder %s26, 1
        %s423 = scalar_select %p422, %s26, 1
        %s424 = smul.addr %s423, 8
        %s425 = scalar_lea.vmem %s1, %s424
        %v426 = vld [vmem:[%s421] sm:$0xff]
        %v427 = vld [vmem:[%s11] sm:$0xff]
        %v428 = vld [vmem:[%s11 + $0x8] sm:$0x1]
        %v429 = vld [vmem:[%s4] sm:$0xff]
        %v430 = vld [vmem:[%s4 + $0x8] sm:$0xff]
        %v431 = vld [vmem:[%s4 + $0x10] sm:$0xff]
        %v432 = vld [vmem:[%s4 + $0x18] sm:$0xff]
        %v433 = vld [vmem:[%s4 + $0x20] sm:$0xff]
        %v434 = vld [vmem:[%s4 + $0x28] sm:$0xff]
        %v435 = vld [vmem:[%s4 + $0x30] sm:$0xff]
        %v436 = vld [vmem:[%s4 + $0x38] sm:$0xff]
        %v437 = vld [vmem:[%s4 + $0x40] sm:$0xff]
        %v438 = vld [vmem:[%s4 + $0x48] sm:$0xff]
        %v439 = vld [vmem:[%s4 + $0x50] sm:$0xff]
        %v440 = vld [vmem:[%s4 + $0x58] sm:$0xff]
        %v441 = vld [vmem:[%s4 + $0x60] sm:$0xff]
        %v442 = vld [vmem:[%s4 + $0x68] sm:$0xff]
        %v443 = vld [vmem:[%s4 + $0x70] sm:$0xff]
        %v444 = vld [vmem:[%s4 + $0x78] sm:$0xff]
        %v445 = vld [vmem:[%s5] sm:$0xff]
        %v446 = vld [vmem:[%s5 + $0x8] sm:$0xff]
        %v447 = vld [vmem:[%s6] sm:$0xff]
        %v448 = vld [vmem:[%s6 + $0x8] sm:$0xff]
        %v449 = vld [vmem:[%s2] sm:$0xff]
        %v450 = vld [vmem:[%s2 + $0x8] sm:$0xff]
        %v451 = vld [vmem:[%s2 + $0x10] sm:$0xff]
        %v452 = vld [vmem:[%s2 + $0x18] sm:$0xff]
        %vm453 = vcmask 261120
        %v455 = vsel %vm453, %v426, 0
        %457 = vmatpush.msra.mxu0 0.0
        %458 = vmatpush.msra.mxu0 0.0
        %459 = vmatpush.msra.mxu0 0.0
        %460 = vmatpush.msra.mxu0 0.0
        %461 = vmatpush.msra.mxu0 0.0
        %462 = vmatpush.msra.mxu0 0.0
        %463 = vmatpush.msra.mxu0 0.0
        %464 = vmatpush.msra.mxu0 0.0
        %465 = vmatpush.msra.mxu0 0.0
        %466 = vmatpush.msra.mxu0 0.0
        %467 = vmatpush.msra.mxu0 0.0
        %468 = vmatpush.msra.mxu0 0.0
        %469 = vmatpush.msra.mxu0 %v452
        %470 = vmatpush.msra.mxu0 %v451
        %471 = vmatpush.msra.mxu0 %v450
        %472 = vmatpush.msra.mxu0 %v449
        %473 = vmatmul.f32.gmra.mxu0 %v455
        %v474 = vpop.f32.mrf.mxu0
        %v475 = vadd.f32 0.0, %v474
        %476 = vdwg.mxu0
        %478 = vrot.lane.b32.xlu0 %v475, 32
        %v479 = vpop.permute.xlu0 %478
        %481 = vrot.lane.b32.xlu0 %v475, 64
        %v482 = vpop.permute.xlu0 %481
        %484 = vrot.lane.b32.xlu0 %v475, 96
        %v485 = vpop.permute.xlu0 %484
        %v487 = vsel %vm453, %v475, %v479
        %vm488 = vcmask 523264
        %v489 = vsel %vm488, %v487, %v482
        %vm490 = vcmask 785408
        %v491 = vsel %vm490, %v489, %v485
        %492 = vrot.lane.b32.xlu0 %v475, 8
        %v493 = vpop.permute.xlu0 %492
        %495 = vrot.lane.b32.xlu0 %v475, 16
        %v496 = vpop.permute.xlu0 %495
        %498 = vrot.lane.b32.xlu0 %v475, 24
        %v499 = vpop.permute.xlu0 %498
        %501 = vrot.lane.b32.xlu0 %v475, 40
        %v502 = vpop.permute.xlu0 %501
        %504 = vrot.lane.b32.xlu0 %v475, 48
        %v505 = vpop.permute.xlu0 %504
        %507 = vrot.lane.b32.xlu0 %v475, 56
        %v508 = vpop.permute.xlu0 %507
        %510 = vrot.lane.b32.xlu0 %v475, 72
        %v511 = vpop.permute.xlu0 %510
        %513 = vrot.lane.b32.xlu0 %v475, 80
        %v514 = vpop.permute.xlu0 %513
        %516 = vrot.lane.b32.xlu0 %v475, 88
        %v517 = vpop.permute.xlu0 %516
        %vm519 = vcmask 64512
        %v520 = vsel %vm519, %v475, %v493
        %vm521 = vcmask 130048
        %v522 = vsel %vm521, %v520, %v496
        %vm523 = vcmask 195584
        %v524 = vsel %vm523, %v522, %v499
        %v525 = vsel %vm453, %v524, %v499
        %vm526 = vcmask 326656
        %v527 = vsel %vm526, %v525, %v479
        %vm528 = vcmask 392192
        %v529 = vsel %vm528, %v527, %v502
        %vm530 = vcmask 457728
        %v531 = vsel %vm530, %v529, %v505
        %v532 = vsel %vm488, %v531, %v505
        %vm533 = vcmask 588800
        %v534 = vsel %vm533, %v532, %v508
        %vm535 = vcmask 654336
        %v536 = vsel %vm535, %v534, %v482
        %vm537 = vcmask 719872
        %v538 = vsel %vm537, %v536, %v511
        %v539 = vsel %vm490, %v538, %v511
        %vm540 = vcmask 850944
        %v541 = vsel %vm540, %v539, %v514
        %vm542 = vcmask 916480
        %v543 = vsel %vm542, %v541, %v517
        %vm544 = vcmask 982016
        %v545 = vsel %vm544, %v543, %v485
        %v546 = vld [vmem:[%s7] sm:$0xff]
        %v547 = vld [vmem:[%s7 + $0x8] sm:$0xff]
        %v548 = vld [vmem:[%s7 + $0x10] sm:$0xff]
        %v549 = vld [vmem:[%s7 + $0x18] sm:$0xff]
        %v550 = vld [vmem:[%s7 + $0x20] sm:$0xff]
        %v551 = vld [vmem:[%s7 + $0x28] sm:$0xff]
        %v552 = vld [vmem:[%s7 + $0x30] sm:$0xff]
        %v553 = vld [vmem:[%s7 + $0x38] sm:$0xff]
        %v554 = vld [vmem:[%s7 + $0x40] sm:$0xff]
        %v555 = vld [vmem:[%s7 + $0x48] sm:$0xff]
        %v556 = vld [vmem:[%s7 + $0x50] sm:$0xff]
        %v557 = vld [vmem:[%s7 + $0x58] sm:$0xff]
        %v558 = vld [vmem:[%s7 + $0x60] sm:$0xff]
        %v559 = vld [vmem:[%s7 + $0x68] sm:$0xff]
        %v560 = vld [vmem:[%s7 + $0x70] sm:$0xff]
        %v561 = vld [vmem:[%s7 + $0x78] sm:$0xff]
        %v562 = vmul.f32 %v545, %v491
        %563 = vmatpush.msra.mxu0 %v444
        %564 = vmatpush.msra.mxu0 %v443
        %565 = vmatpush.msra.mxu0 %v442
        %566 = vmatpush.msra.mxu0 %v441
        %567 = vmatpush.msra.mxu0 %v440
        %568 = vmatpush.msra.mxu0 %v439
        %569 = vmatpush.msra.mxu0 %v438
        %570 = vmatpush.msra.mxu0 %v437
        %571 = vmatpush.msra.mxu0 %v436
        %572 = vmatpush.msra.mxu0 %v435
        %573 = vmatpush.msra.mxu0 %v434
        %574 = vmatpush.msra.mxu0 %v433
        %575 = vmatpush.msra.mxu0 %v432
        %576 = vmatpush.msra.mxu0 %v431
        %577 = vmatpush.msra.mxu0 %v430
        %578 = vmatpush.msra.mxu0 %v429
        %579 = vmatmul.f32.gmra.mxu0 %v562
        %v580 = vpop.f32.mrf.mxu0
        %v581 = vadd.f32 0.0, %v580
        %582 = vdwg.mxu0
        %v583 = vperm.slane %v427, 0
        %v584 = vmul.f32 %v581, %v583
        %v585 = vsel %vm521, %v584, -inf
        %586 = vmax.xlane.f32.xlu0 %v585
        %v587 = vpop.xlane.xlu0 %586
        %v588 = vsub.f32 %v584, %v587
        %v589 = vmul.f32 %v588, 1.442695
        %v590 = vpow.pop %v589
        %v592 = vsel %vm521, %v590, 0
        %594 = vmatpush.msra.mxu0 0.0
        %595 = vmatpush.msra.mxu0 0.0
        %596 = vmatpush.msra.mxu0 0.0
        %597 = vmatpush.msra.mxu0 0.0
        %598 = vmatpush.msra.mxu0 0.0
        %599 = vmatpush.msra.mxu0 0.0
        %600 = vmatpush.msra.mxu0 0.0
        %601 = vmatpush.msra.mxu0 0.0
        %602 = vmatpush.msra.mxu0 0.0
        %603 = vmatpush.msra.mxu0 0.0
        %604 = vmatpush.msra.mxu0 0.0
        %605 = vmatpush.msra.mxu0 0.0
        %606 = vmatpush.msra.mxu0 0.0
        %607 = vmatpush.msra.mxu0 0.0
        %608 = vmatpush.msra.mxu0 %v446
        %609 = vmatpush.msra.mxu0 %v445
        %610 = vmatmul.f32.gmra.mxu0 %v592
        %v611 = vpop.f32.mrf.mxu0
        %v612 = vadd.f32 0.0, %v611
        %613 = vdwg.mxu0
        %v614 = vrcp.pop %v612
        %v615 = vmul.f32 %v612, %v614
        %v616 = vsub.f32 2.0, %v615
        %v617 = vmul.f32 %v614, %v616
        %v618 = vmul.f32 %v590, %v617
        %v620 = vsel %vm521, %v618, 0
        %622 = vmatpush.msra.mxu0 0.0
        %623 = vmatpush.msra.mxu0 0.0
        %624 = vmatpush.msra.mxu0 0.0
        %625 = vmatpush.msra.mxu0 0.0
        %626 = vmatpush.msra.mxu0 0.0
        %627 = vmatpush.msra.mxu0 0.0
        %628 = vmatpush.msra.mxu0 0.0
        %629 = vmatpush.msra.mxu0 0.0
        %630 = vmatpush.msra.mxu0 0.0
        %631 = vmatpush.msra.mxu0 0.0
        %632 = vmatpush.msra.mxu0 0.0
        %633 = vmatpush.msra.mxu0 0.0
        %634 = vmatpush.msra.mxu0 0.0
        %635 = vmatpush.msra.mxu0 0.0
        %636 = vmatpush.msra.mxu0 %v448
        %637 = vmatpush.msra.mxu0 %v447
        %638 = vmatmul.f32.gmra.mxu0 %v620
        %v639 = vpop.f32.mrf.mxu0
        %v640 = vadd.f32 0.0, %v639
        %641 = vdwg.mxu0
        %v642 = vmul.f32 %v640, %v491
        %643 = vmatpush.msra.mxu0 %v561
        %644 = vmatpush.msra.mxu0 %v560
        %645 = vmatpush.msra.mxu0 %v559
        %646 = vmatpush.msra.mxu0 %v558
        %647 = vmatpush.msra.mxu0 %v557
        %648 = vmatpush.msra.mxu0 %v556
        %649 = vmatpush.msra.mxu0 %v555
        %650 = vmatpush.msra.mxu0 %v554
        %651 = vmatpush.msra.mxu0 %v553
        %652 = vmatpush.msra.mxu0 %v552
        %653 = vmatpush.msra.mxu0 %v551
        %654 = vmatpush.msra.mxu0 %v550
        %655 = vmatpush.msra.mxu0 %v549
        %656 = vmatpush.msra.mxu0 %v548
        %657 = vmatpush.msra.mxu0 %v547
        %658 = vmatpush.msra.mxu0 %v546
        %659 = vmatmul.f32.gmra.mxu0 %v642
        %v660 = vpop.f32.mrf.mxu0
        %v661 = vadd.f32 0.0, %v660
        %662 = vdwg.mxu0
        %v663 = vadd.f32 %v426, %v661
        %v664 = vsel %vm453, %v663, 0.0
        %665 = vadd.xlane.f32.xlu0 %v664
        %v666 = vpop.xlane.xlu0 %665
        %v667 = vrcp.pop 32.0
        %v668 = vmul.f32 32.0, %v667
        %v669 = vsub.f32 1.0, %v668
        %v670 = vmul.f32 %v667, %v669
        %v671 = vadd.f32 %v667, %v670
        %vm672 = vweird.f32 %v667
        %v673 = vsel %vm672, %v667, %v671
        %v674 = vmul.f32 %v666, %v673
        %v675 = vsub.f32 %v663, %v674
        %v676 = vmul.f32 %v675, %v675
        %v677 = vsel %vm453, %v676, 0.0
        %678 = vadd.xlane.f32.xlu0 %v677
        %v679 = vpop.xlane.xlu0 %678
        %v680 = vmul.f32 %v679, %v673
        %v681 = vadd.f32 %v680, 1e-05
        %v682 = vrsqrt.pop %v681
        %v683 = vmul.f32 %v682, %v681
        %v684 = vmul.f32 %v683, %v682
        %v685 = vmul.f32 0.5, %v684
        %v686 = vsub.f32 1.5, %v685
        %v687 = vmul.f32 %v682, %v686
        %vm688 = vweird.f32 %v681
        %vm689 = vweird.f32 %v682
        %vm690 = vmor %vm688, %vm689
        %v691 = vsel %vm690, %v682, %v687
        %v692 = vmul.f32 %v675, %v691
        %v693 = vperm.slane %v427, 3
        %v694 = vmul.f32 %v692, %v693
        %v695 = vperm.slane %v427, 4
        %v696 = vadd.f32 %v694, %v695
        %v697 = vld [vmem:[%s425] sm:$0xff]
        %v698 = vld [vmem:[%s3] sm:$0xff]
        %v699 = vld [vmem:[%s3 + $0x8] sm:$0xff]
        %v700 = vld [vmem:[%s3 + $0x10] sm:$0xff]
        %v701 = vld [vmem:[%s3 + $0x18] sm:$0xff]
        %v703 = vsel %vm453, %v697, 0
        %705 = vmatpush.msra.mxu0 0.0
        %706 = vmatpush.msra.mxu0 0.0
        %707 = vmatpush.msra.mxu0 0.0
        %708 = vmatpush.msra.mxu0 0.0
        %709 = vmatpush.msra.mxu0 0.0
        %710 = vmatpush.msra.mxu0 0.0
        %711 = vmatpush.msra.mxu0 0.0
        %712 = vmatpush.msra.mxu0 0.0
        %713 = vmatpush.msra.mxu0 0.0
        %714 = vmatpush.msra.mxu0 0.0
        %715 = vmatpush.msra.mxu0 0.0
        %716 = vmatpush.msra.mxu0 0.0
        %717 = vmatpush.msra.mxu0 %v701
        %718 = vmatpush.msra.mxu0 %v700
        %719 = vmatpush.msra.mxu0 %v699
        %720 = vmatpush.msra.mxu0 %v698
        %721 = vmatmul.f32.gmra.mxu0 %v703
        %v722 = vpop.f32.mrf.mxu0
        %v723 = vadd.f32 0.0, %v722
        %724 = vdwg.mxu0
        %725 = vmatpush.msra.mxu0 0.0
        %726 = vmatpush.msra.mxu0 0.0
        %727 = vmatpush.msra.mxu0 0.0
        %728 = vmatpush.msra.mxu0 0.0
        %729 = vmatpush.msra.mxu0 0.0
        %730 = vmatpush.msra.mxu0 0.0
        %731 = vmatpush.msra.mxu0 0.0
        %732 = vmatpush.msra.mxu0 0.0
        %733 = vmatpush.msra.mxu0 0.0
        %734 = vmatpush.msra.mxu0 0.0
        %735 = vmatpush.msra.mxu0 0.0
        %736 = vmatpush.msra.mxu0 0.0
        %737 = vmatpush.msra.mxu0 %v701
        %738 = vmatpush.msra.mxu0 %v700
        %739 = vmatpush.msra.mxu0 %v699
        %740 = vmatpush.msra.mxu0 %v698
        %741 = vmatmul.f32.gmra.mxu0 %v455
        %v742 = vpop.f32.mrf.mxu0
        %v743 = vadd.f32 0.0, %v742
        %744 = vdwg.mxu0
        %746 = vrot.lane.b32.xlu0 %v723, 8
        %v747 = vpop.permute.xlu0 %746
        %749 = vrot.lane.b32.xlu0 %v723, 16
        %v750 = vpop.permute.xlu0 %749
        %752 = vrot.lane.b32.xlu0 %v723, 24
        %v753 = vpop.permute.xlu0 %752
        %755 = vrot.lane.b32.xlu0 %v723, 32
        %v756 = vpop.permute.xlu0 %755
        %758 = vrot.lane.b32.xlu0 %v723, 40
        %v759 = vpop.permute.xlu0 %758
        %761 = vrot.lane.b32.xlu0 %v723, 48
        %v762 = vpop.permute.xlu0 %761
        %764 = vrot.lane.b32.xlu0 %v723, 56
        %v765 = vpop.permute.xlu0 %764
        %767 = vrot.lane.b32.xlu0 %v723, 64
        %v768 = vpop.permute.xlu0 %767
        %770 = vrot.lane.b32.xlu0 %v723, 72
        %v771 = vpop.permute.xlu0 %770
        %773 = vrot.lane.b32.xlu0 %v723, 80
        %v774 = vpop.permute.xlu0 %773
        %776 = vrot.lane.b32.xlu0 %v723, 88
        %v777 = vpop.permute.xlu0 %776
        %779 = vrot.lane.b32.xlu0 %v723, 96
        %v780 = vpop.permute.xlu0 %779
        %v782 = vsel %vm519, %v723, %v747
        %v783 = vsel %vm521, %v782, %v750
        %v784 = vsel %vm523, %v783, %v753
        %v785 = vsel %vm453, %v784, %v753
        %v786 = vsel %vm526, %v785, %v756
        %v787 = vsel %vm528, %v786, %v759
        %v788 = vsel %vm530, %v787, %v762
        %v789 = vsel %vm488, %v788, %v762
        %v790 = vsel %vm533, %v789, %v765
        %v791 = vsel %vm535, %v790, %v768
        %v792 = vsel %vm537, %v791, %v771
        %v793 = vsel %vm490, %v792, %v771
        %v794 = vsel %vm540, %v793, %v774
        %v795 = vsel %vm542, %v794, %v777
        %v796 = vsel %vm544, %v795, %v780
        %v797 = vsel %vm453, %v723, %v756
        %v798 = vsel %vm488, %v797, %v768
        %v799 = vsel %vm490, %v798, %v780
        %801 = vrot.lane.b32.xlu0 %v743, 32
        %v802 = vpop.permute.xlu0 %801
        %804 = vrot.lane.b32.xlu0 %v743, 64
        %v805 = vpop.permute.xlu0 %804
        %807 = vrot.lane.b32.xlu0 %v743, 96
        %v808 = vpop.permute.xlu0 %807
        %v810 = vsel %vm453, %v743, %v802
        %v811 = vsel %vm488, %v810, %v805
        %v812 = vsel %vm490, %v811, %v808
        %v813 = vld [vmem:[%s8] sm:$0xff]
        %v814 = vld [vmem:[%s8 + $0x8] sm:$0xff]
        %v815 = vld [vmem:[%s8 + $0x10] sm:$0xff]
        %v816 = vld [vmem:[%s8 + $0x18] sm:$0xff]
        %v817 = vld [vmem:[%s8 + $0x20] sm:$0xff]
        %v818 = vld [vmem:[%s8 + $0x28] sm:$0xff]
        %v819 = vld [vmem:[%s8 + $0x30] sm:$0xff]
        %v820 = vld [vmem:[%s8 + $0x38] sm:$0xff]
        %v821 = vld [vmem:[%s8 + $0x40] sm:$0xff]
        %v822 = vld [vmem:[%s8 + $0x48] sm:$0xff]
        %v823 = vld [vmem:[%s8 + $0x50] sm:$0xff]
        %v824 = vld [vmem:[%s8 + $0x58] sm:$0xff]
        %v825 = vld [vmem:[%s8 + $0x60] sm:$0xff]
        %v826 = vld [vmem:[%s8 + $0x68] sm:$0xff]
        %v827 = vld [vmem:[%s8 + $0x70] sm:$0xff]
        %v828 = vld [vmem:[%s8 + $0x78] sm:$0xff]
        %v829 = vmul.f32 %v796, %v799
        %830 = vmatpush.msra.mxu0 %v444
        %831 = vmatpush.msra.mxu0 %v443
        %832 = vmatpush.msra.mxu0 %v442
        %833 = vmatpush.msra.mxu0 %v441
        %834 = vmatpush.msra.mxu0 %v440
        %835 = vmatpush.msra.mxu0 %v439
        %836 = vmatpush.msra.mxu0 %v438
        %837 = vmatpush.msra.mxu0 %v437
        %838 = vmatpush.msra.mxu0 %v436
        %839 = vmatpush.msra.mxu0 %v435
        %840 = vmatpush.msra.mxu0 %v434
        %841 = vmatpush.msra.mxu0 %v433
        %842 = vmatpush.msra.mxu0 %v432
        %843 = vmatpush.msra.mxu0 %v431
        %844 = vmatpush.msra.mxu0 %v430
        %845 = vmatpush.msra.mxu0 %v429
        %846 = vmatmul.f32.gmra.mxu0 %v829
        %v847 = vpop.f32.mrf.mxu0
        %v848 = vadd.f32 0.0, %v847
        %849 = vdwg.mxu0
        %v850 = vsel %vm521, %v848, -inf
        %851 = vmax.xlane.f32.xlu0 %v850
        %v852 = vpop.xlane.xlu0 %851
        %v853 = vsub.f32 %v848, %v852
        %v854 = vmul.f32 %v853, 1.442695
        %v855 = vpow.pop %v854
        %v857 = vsel %vm521, %v855, 0
        %859 = vmatpush.msra.mxu0 0.0
        %860 = vmatpush.msra.mxu0 0.0
        %861 = vmatpush.msra.mxu0 0.0
        %862 = vmatpush.msra.mxu0 0.0
        %863 = vmatpush.msra.mxu0 0.0
        %864 = vmatpush.msra.mxu0 0.0
        %865 = vmatpush.msra.mxu0 0.0
        %866 = vmatpush.msra.mxu0 0.0
        %867 = vmatpush.msra.mxu0 0.0
        %868 = vmatpush.msra.mxu0 0.0
        %869 = vmatpush.msra.mxu0 0.0
        %870 = vmatpush.msra.mxu0 0.0
        %871 = vmatpush.msra.mxu0 0.0
        %872 = vmatpush.msra.mxu0 0.0
        %873 = vmatpush.msra.mxu0 %v446
        %874 = vmatpush.msra.mxu0 %v445
        %875 = vmatmul.f32.gmra.mxu0 %v857
        %v876 = vpop.f32.mrf.mxu0
        %v877 = vadd.f32 0.0, %v876
        %878 = vdwg.mxu0
        %v879 = vrcp.pop %v877
        %v880 = vmul.f32 %v877, %v879
        %v881 = vsub.f32 2.0, %v880
        %v882 = vmul.f32 %v879, %v881
        %v883 = vmul.f32 %v855, %v882
        %v885 = vsel %vm521, %v883, 0
        %887 = vmatpush.msra.mxu0 0.0
        %888 = vmatpush.msra.mxu0 0.0
        %889 = vmatpush.msra.mxu0 0.0
        %890 = vmatpush.msra.mxu0 0.0
        %891 = vmatpush.msra.mxu0 0.0
        %892 = vmatpush.msra.mxu0 0.0
        %893 = vmatpush.msra.mxu0 0.0
        %894 = vmatpush.msra.mxu0 0.0
        %895 = vmatpush.msra.mxu0 0.0
        %896 = vmatpush.msra.mxu0 0.0
        %897 = vmatpush.msra.mxu0 0.0
        %898 = vmatpush.msra.mxu0 0.0
        %899 = vmatpush.msra.mxu0 0.0
        %900 = vmatpush.msra.mxu0 0.0
        %901 = vmatpush.msra.mxu0 %v448
        %902 = vmatpush.msra.mxu0 %v447
        %903 = vmatmul.f32.gmra.mxu0 %v885
        %v904 = vpop.f32.mrf.mxu0
        %v905 = vadd.f32 0.0, %v904
        %906 = vdwg.mxu0
        %v907 = vmul.f32 %v905, %v812
        %908 = vmatpush.msra.mxu0 %v828
        %909 = vmatpush.msra.mxu0 %v827
        %910 = vmatpush.msra.mxu0 %v826
        %911 = vmatpush.msra.mxu0 %v825
        %912 = vmatpush.msra.mxu0 %v824
        %913 = vmatpush.msra.mxu0 %v823
        %914 = vmatpush.msra.mxu0 %v822
        %915 = vmatpush.msra.mxu0 %v821
        %916 = vmatpush.msra.mxu0 %v820
        %917 = vmatpush.msra.mxu0 %v819
        %918 = vmatpush.msra.mxu0 %v818
        %919 = vmatpush.msra.mxu0 %v817
        %920 = vmatpush.msra.mxu0 %v816
        %921 = vmatpush.msra.mxu0 %v815
        %922 = vmatpush.msra.mxu0 %v814
        %923 = vmatpush.msra.mxu0 %v813
        %924 = vmatmul.f32.gmra.mxu0 %v907
        %v925 = vpop.f32.mrf.mxu0
        %v926 = vadd.f32 0.0, %v925
        %927 = vdwg.mxu0
        %v928 = vadd.f32 %v696, %v926
        %v929 = vsel %vm453, %v928, 0.0
        %930 = vadd.xlane.f32.xlu0 %v929
        %v931 = vpop.xlane.xlu0 %930
        %v932 = vmul.f32 %v931, %v673
        %v933 = vsub.f32 %v928, %v932
        %v934 = vmul.f32 %v933, %v933
        %v935 = vsel %vm453, %v934, 0.0
        %936 = vadd.xlane.f32.xlu0 %v935
        %v937 = vpop.xlane.xlu0 %936
        %v938 = vmul.f32 %v937, %v673
        %v939 = vadd.f32 %v938, 1e-05
        %v940 = vrsqrt.pop %v939
        %v941 = vmul.f32 %v940, %v939
        %v942 = vmul.f32 %v941, %v940
        %v943 = vmul.f32 0.5, %v942
        %v944 = vsub.f32 1.5, %v943
        %v945 = vmul.f32 %v940, %v944
        %vm946 = vweird.f32 %v939
        %vm947 = vweird.f32 %v940
        %vm948 = vmor %vm946, %vm947
        %v949 = vsel %vm948, %v940, %v945
        %v950 = vmul.f32 %v933, %v949
        %v951 = vperm.slane %v427, 5
        %v952 = vmul.f32 %v950, %v951
        %v953 = vperm.slane %v427, 6
        %v954 = vadd.f32 %v952, %v953
        %v955 = vld [vmem:[%s9] sm:$0xff]
        %v956 = vld [vmem:[%s9 + $0x8] sm:$0xff]
        %v957 = vld [vmem:[%s9 + $0x10] sm:$0xff]
        %v958 = vld [vmem:[%s9 + $0x18] sm:$0xff]
        %v959 = vperm.slane %v427, 1
        %v961 = vsel %vm453, %v954, 0
        %963 = vmatpush.msra.mxu0 0.0
        %964 = vmatpush.msra.mxu0 0.0
        %965 = vmatpush.msra.mxu0 0.0
        %966 = vmatpush.msra.mxu0 0.0
        %967 = vmatpush.msra.mxu0 0.0
        %968 = vmatpush.msra.mxu0 0.0
        %969 = vmatpush.msra.mxu0 0.0
        %970 = vmatpush.msra.mxu0 0.0
        %971 = vmatpush.msra.mxu0 0.0
        %972 = vmatpush.msra.mxu0 0.0
        %973 = vmatpush.msra.mxu0 0.0
        %974 = vmatpush.msra.mxu0 0.0
        %975 = vmatpush.msra.mxu0 %v958
        %976 = vmatpush.msra.mxu0 %v957
        %977 = vmatpush.msra.mxu0 %v956
        %978 = vmatpush.msra.mxu0 %v955
        %979 = vmatmul.f32.gmra.mxu0 %v961
        %v980 = vpop.f32.mrf.mxu0
        %v981 = vadd.f32 %v959, %v980
        %982 = vdwg.mxu0
        %v983 = vmax.f32 %v981, 0.0
        %v984 = vld [vmem:[%s10] sm:$0xff]
        %v985 = vld [vmem:[%s10 + $0x8] sm:$0xff]
        %v986 = vld [vmem:[%s10 + $0x10] sm:$0xff]
        %v987 = vld [vmem:[%s10 + $0x18] sm:$0xff]
        %v988 = vld [vmem:[%s10 + $0x20] sm:$0xff]
        %v989 = vld [vmem:[%s10 + $0x28] sm:$0xff]
        %v990 = vld [vmem:[%s10 + $0x30] sm:$0xff]
        %v991 = vld [vmem:[%s10 + $0x38] sm:$0xff]
        %v992 = vperm.slane %v427, 2
        %v994 = vsel %vm488, %v983, 0
        %996 = vmatpush.msra.mxu0 0.0
        %997 = vmatpush.msra.mxu0 0.0
        %998 = vmatpush.msra.mxu0 0.0
        %999 = vmatpush.msra.mxu0 0.0
        %1000 = vmatpush.msra.mxu0 0.0
        %1001 = vmatpush.msra.mxu0 0.0
        %1002 = vmatpush.msra.mxu0 0.0
        %1003 = vmatpush.msra.mxu0 0.0
        %1004 = vmatpush.msra.mxu0 %v991
        %1005 = vmatpush.msra.mxu0 %v990
        %1006 = vmatpush.msra.mxu0 %v989
        %1007 = vmatpush.msra.mxu0 %v988
        %1008 = vmatpush.msra.mxu0 %v987
        %1009 = vmatpush.msra.mxu0 %v986
        %1010 = vmatpush.msra.mxu0 %v985
        %1011 = vmatpush.msra.mxu0 %v984
        %1012 = vmatmul.f32.gmra.mxu0 %v994
        %v1013 = vpop.f32.mrf.mxu0
        %v1014 = vadd.f32 %v992, %v1013
        %1015 = vdwg.mxu0
        %v1016 = vadd.f32 %v954, %v1014
        %v1017 = vsel %vm453, %v1016, 0.0
        %1018 = vadd.xlane.f32.xlu0 %v1017
        %v1019 = vpop.xlane.xlu0 %1018
        %v1020 = vmul.f32 %v1019, %v673
        %v1021 = vsub.f32 %v1016, %v1020
        %v1022 = vmul.f32 %v1021, %v1021
        %v1023 = vsel %vm453, %v1022, 0.0
        %1024 = vadd.xlane.f32.xlu0 %v1023
        %v1025 = vpop.xlane.xlu0 %1024
        %v1026 = vmul.f32 %v1025, %v673
        %v1027 = vadd.f32 %v1026, 1e-05
        %v1028 = vrsqrt.pop %v1027
        %v1029 = vmul.f32 %v1028, %v1027
        %v1030 = vmul.f32 %v1029, %v1028
        %v1031 = vmul.f32 0.5, %v1030
        %v1032 = vsub.f32 1.5, %v1031
        %v1033 = vmul.f32 %v1028, %v1032
        %vm1034 = vweird.f32 %v1027
        %vm1035 = vweird.f32 %v1028
        %vm1036 = vmor %vm1034, %vm1035
        %v1037 = vsel %vm1036, %v1028, %v1033
        %v1038 = vmul.f32 %v1021, %v1037
        %v1039 = vperm.slane %v427, 7
        %v1040 = vmul.f32 %v1038, %v1039
        %v1041 = vperm.slane %v428, 0
        %v1042 = vadd.f32 %v1040, %v1041
        %1043 = vst.msk [vmem:[%s417] sm:$0xff] %vm453, %v1042
        %s1044 = sand.u32 %s296, 1
        %s1045 = scalar_lea.sflag [#allocation3], %s1044
        %s1046 = sand.u32 %s296, 1
        %s1047 = smul.addr %s1046, 8
        %s1048 = scalar_lea.vmem [#allocation2], %s1047
        // Predicated region
        $region69: #{tpu_custom_call.1} parent=67 // pred_check
          %p1049 = pneg %p306
        $region70: #{tpu_custom_call.1} parent=67 // pred_check_branch
          %1051 = sbr.rel (%p1049) target = $region72
        $region71: #{tpu_custom_call.1} parent=67 // pred_region
          %1053 = vsyncadd %s1045, 0
          %s1054 = smul.addr %s26, 8
          %s1055 = scalar_lea.hbm %s12, %s1054
          %s1057 = sshll.u32 %s1048, 4
          %s1058 = int_to_ptr.vmem [resolvable:$true] %s1057
          %s1059 = sshll.u32 %s1055, 4
          %s1060 = int_to_ptr.hbm [resolvable:$true] %s1059
          %1062 = dma.vmem_to_hbm [thread:$0]  %s1058, 128, %s1060, %s1045
        $region72: #{tpu_custom_call.1} parent=67 // pred_fallthru
          _
      $region68: #{tpu_custom_call.1} parent=5 // pred_fallthru
        _
      %p1063 = scmp.le.s32.totalorder 2, %s21
      // Predicated region
      $region73: #{tpu_custom_call.1} parent=5 // pred_check
        %p1064 = pneg %p1063
      $region74: #{tpu_custom_call.1} parent=5 // pred_check_branch
        %1066 = sbr.rel (%p1064) target = $region76
      $region75: #{tpu_custom_call.1} parent=5 // pred_region
        %s1067 = ssub.s32 %s21, 2
        // Predicated region
        $region77: #{tpu_custom_call.1} parent=75 // pred_check
          %p1068 = pneg %p312
        $region78: #{tpu_custom_call.1} parent=75 // pred_check_branch
          %1070 = sbr.rel (%p1068) target = $region80
        $region79: #{tpu_custom_call.1} parent=75 // pred_region
          %s1071 = sand.u32 %s297, 1
          %s1072 = scalar_lea.sflag [#allocation3], %s1071
          %s1073 = sand.u32 %s297, 1
          %s1074 = smul.addr %s1073, 8
          %s1075 = scalar_lea.vmem [#allocation2], %s1074
          %1077 = dma.done %s1072, 128
        $region80: #{tpu_custom_call.1} parent=75 // pred_fallthru
          _
      $region76: #{tpu_custom_call.1} parent=5 // pred_fallthru
        _
    $region6: #{tpu_custom_call.1} parent=1 // loop_footer
      %s25 = sadd.s32 1, %s21
    $region7: #{tpu_custom_call.1} parent=1 // loop_footer_branch
      %20 = sbr.rel target = $region3
    $region8: #{tpu_custom_call.1} parent=1 // loop_exit
      _
    %1078 = vsyncpa [#allocation3], 1
    %s1079 = scalar_lea.sflag [#allocation3], 1
    %1080 = vsyncpa %s1079, 1

// kernel: tpu_custom_call.1
$region0: #{tpu_custom_call.1}
  #allocation0 [shape = 'u32[]', space=smem, size = 0x4, offset = 0x4, fixed_abs, tag = 'smem constant byte address 0x4 - core index']
  #allocation1 [shape = 'u32[72,128]{1,0:T(1,128)}', space=vmem, size = 0x9000, scoped, tag = 'internal scratch']
  %s0 = inlined_call_operand.vmem [shape: f32[16,32], index: 0, kind: input, shape index: {}]
  %s1 = inlined_call_operand.vmem [shape: f32[16,32], index: 1, kind: input, shape index: {}]
  %s2 = inlined_call_operand.vmem [shape: f32[32,32], index: 2, kind: input, shape index: {}]
  %s3 = inlined_call_operand.vmem [shape: f32[32,32], index: 3, kind: input, shape index: {}]
  %s4 = inlined_call_operand.vmem [shape: f32[128,16], index: 4, kind: input, shape index: {}]
  %s5 = inlined_call_operand.vmem [shape: f32[16,16], index: 5, kind: input, shape index: {}]
  %s6 = inlined_call_operand.vmem [shape: f32[16,128], index: 6, kind: input, shape index: {}]
  %s7 = inlined_call_operand.vmem [shape: f32[128,32], index: 7, kind: input, shape index: {}]
  %s8 = inlined_call_operand.vmem [shape: f32[128,32], index: 8, kind: input, shape index: {}]
  %s9 = inlined_call_operand.vmem [shape: f32[32,64], index: 9, kind: input, shape index: {}]
  %s10 = inlined_call_operand.vmem [shape: f32[64,32], index: 10, kind: input, shape index: {}]
  %s11 = inlined_call_operand.vmem [shape: f32[9,64], index: 11, kind: input, shape index: {}]
  %s12 = inlined_call_operand.hbm [shape: f32[16,32], index: 12, kind: output, shape index: {}]
  %s13 = sld [smem:[#allocation0]]
  $region81: #{tpu_custom_call.1} parent=0
    _
  %s15 = ssub.s32 1, %s13
  %s16 = scalar_select 0, %s15, %s13
  $region1: #{tpu_custom_call.1} parent=0
    #allocation2 [shape = 'u8[8192]{0}', space=vmem, size = 0x2000, scoped, tag = 'output window, operand 0']
    #allocation3 [shape = 's32[2]{0}', space=sflag, size = 0x8, scoped, tag = 'scoped memory for tpu_custom_call.1']
    %17 = vsyncpa [#allocation3], 0
    %s18 = scalar_lea.sflag [#allocation3], 1
    %19 = vsyncpa %s18, 0
    loop: start=0, step=1, limit=4
    $region2: #{tpu_custom_call.1} parent=1 // loop_pre_header
      _
    $region3: #{tpu_custom_call.1} parent=1 // loop_header
      %s21 = sphi 0, %s25
      %p22 = scmp.ge.s32.totalorder %s21, 4
      %s31 = sphi 0, %s33
      %s34 = sphi 0, %s31
      %s35 = sphi 0, %s34
      %s51 = sphi 0, %s35
      %s57 = sphi 0, %s59
      %s60 = sphi 0, %s57
      %s61 = sphi 0, %s60
      %s77 = sphi 0, %s61
      %s81 = sphi 0, %s81
      %s83 = sphi 0, %s81
      %s84 = sphi 0, %s83
      %s98 = sphi 0, %s84
      %s102 = sphi 0, %s102
      %s104 = sphi 0, %s102
      %s105 = sphi 0, %s104
      %s119 = sphi 0, %s105
      %s123 = sphi 0, %s123
      %s125 = sphi 0, %s123
      %s126 = sphi 0, %s125
      %s140 = sphi 0, %s126
      %s144 = sphi 0, %s144
      %s146 = sphi 0, %s144
      %s147 = sphi 0, %s146
      %s161 = sphi 0, %s147
      %s165 = sphi 0, %s165
      %s167 = sphi 0, %s165
      %s168 = sphi 0, %s167
      %s182 = sphi 0, %s168
      %s186 = sphi 0, %s186
      %s188 = sphi 0, %s186
      %s189 = sphi 0, %s188
      %s203 = sphi 0, %s189
      %s207 = sphi 0, %s207
      %s209 = sphi 0, %s207
      %s210 = sphi 0, %s209
      %s224 = sphi 0, %s210
      %s228 = sphi 0, %s228
      %s230 = sphi 0, %s228
      %s231 = sphi 0, %s230
      %s245 = sphi 0, %s231
      %s249 = sphi 0, %s249
      %s251 = sphi 0, %s249
      %s252 = sphi 0, %s251
      %s266 = sphi 0, %s252
      %s270 = sphi 0, %s270
      %s272 = sphi 0, %s270
      %s273 = sphi 0, %s272
      %s287 = sphi 0, %s273
      %s293 = sphi 0, %s295
      %s296 = sphi 0, %s293
      %s297 = sphi 0, %s296
      %s313 = sphi 0, %s297
    $region4: #{tpu_custom_call.1} parent=1 // loop_header_branch
      %24 = sbr.rel (%p22) target = $region8
    $region5: #{tpu_custom_call.1} parent=1 // loop_body
      %s26 = ssub.s32 %s21, 1
      %s27 = ssub.s32 %s21, 2
      %s28 = sadd.s32 %s21, 1
      %s29 = ssub.s32 %s21, %s28
      %p30 = scmp.eq.s32.totalorder %s29, 0
      %s32 = sadd.s32 %s31, 1
      %s33 = scalar_select %p30, %s31, %s32
      %p36 = pneg %p30
      %p37 = scmp.eq.s32.totalorder %s21, 1
      %p38 = por %p36, %p37
      %p39 = scmp.ne.s32.totalorder %s31, %s34
      %p40 = scmp.eq.s32.totalorder %s21, 0
      %p41 = por %p39, %p40
      %p42 = scmp.ne.s32.totalorder %s31, %s34
      %p43 = scmp.eq.s32.totalorder %s26, 1
      %p44 = por %p42, %p43
      %p45 = scmp.ne.s32.totalorder %s34, %s35
      %p46 = scmp.eq.s32.totalorder %s26, 0
      %p47 = por %p45, %p46
      %p48 = scmp.ne.s32.totalorder %s34, %s35
      %p49 = scmp.eq.s32.totalorder %s27, 1
      %p50 = por %p48, %p49
      %p52 = scmp.ne.s32.totalorder %s35, %s51
      %p53 = scmp.eq.s32.totalorder %s27, 0
      %p54 = por %p52, %p53
      %s55 = ssub.s32 %s21, %s28
      %p56 = scmp.eq.s32.totalorder %s55, 0
      %s58 = sadd.s32 %s57, 1
      %s59 = scalar_select %p56, %s57, %s58
      %p62 = pneg %p56
      %p63 = scmp.eq.s32.totalorder %s21, 1
      %p64 = por %p62, %p63
      %p65 = scmp.ne.s32.totalorder %s57, %s60
      %p66 = scmp.eq.s32.totalorder %s21, 0
      %p67 = por %p65, %p66
      %p68 = scmp.ne.s32.totalorder %s57, %s60
      %p69 = scmp.eq.s32.totalorder %s26, 1
      %p70 = por %p68, %p69
      %p71 = scmp.ne.s32.totalorder %s60, %s61
      %p72 = scmp.eq.s32.totalorder %s26, 0
      %p73 = por %p71, %p72
      %p74 = scmp.ne.s32.totalorder %s60, %s61
      %p75 = scmp.eq.s32.totalorder %s27, 1
      %p76 = por %p74, %p75
      %p78 = scmp.ne.s32.totalorder %s61, %s77
      %p79 = scmp.eq.s32.totalorder %s27, 0
      %p80 = por %p78, %p79
      %s82 = sadd.s32 %s81, 1
      %p85 = scmp.eq.s32.totalorder %s21, 1
      %p86 = scmp.ne.s32.totalorder %s81, %s83
      %p87 = scmp.eq.s32.totalorder %s21, 0
      %p88 = por %p86, %p87
      %p89 = scmp.ne.s32.totalorder %s81, %s83
      %p90 = scmp.eq.s32.totalorder %s26, 1
      %p91 = por %p89, %p90
      %p92 = scmp.ne.s32.totalorder %s83, %s84
      %p93 = scmp.eq.s32.totalorder %s26, 0
      %p94 = por %p92, %p93
      %p95 = scmp.ne.s32.totalorder %s83, %s84
      %p96 = scmp.eq.s32.totalorder %s27, 1
      %p97 = por %p95, %p96
      %p99 = scmp.ne.s32.totalorder %s84, %s98
      %p100 = scmp.eq.s32.totalorder %s27, 0
      %p101 = por %p99, %p100
      %s103 = sadd.s32 %s102, 1
      %p106 = scmp.eq.s32.totalorder %s21, 1
      %p107 = scmp.ne.s32.totalorder %s102, %s104
      %p108 = scmp.eq.s32.totalorder %s21, 0
      %p109 = por %p107, %p108
      %p110 = scmp.ne.s32.totalorder %s102, %s104
      %p111 = scmp.eq.s32.totalorder %s26, 1
      %p112 = por %p110, %p111
      %p113 = scmp.ne.s32.totalorder %s104, %s105
      %p114 = scmp.eq.s32.totalorder %s26, 0
      %p115 = por %p113, %p114
      %p116 = scmp.ne.s32.totalorder %s104, %s105
      %p117 = scmp.eq.s32.totalorder %s27, 1
      %p118 = por %p116, %p117
      %p120 = scmp.ne.s32.totalorder %s105, %s119
      %p121 = scmp.eq.s32.totalorder %s27, 0
      %p122 = por %p120, %p121
      %s124 = sadd.s32 %s123, 1
      %p127 = scmp.eq.s32.totalorder %s21, 1
      %p128 = scmp.ne.s32.totalorder %s123, %s125
      %p129 = scmp.eq.s32.totalorder %s21, 0
      %p130 = por %p128, %p129
      %p131 = scmp.ne.s32.totalorder %s123, %s125
      %p132 = scmp.eq.s32.totalorder %s26, 1
      %p133 = por %p131, %p132
      %p134 = scmp.ne.s32.totalorder %s125, %s126
      %p135 = scmp.eq.s32.totalorder %s26, 0
      %p136 = por %p134, %p135
      %p137 = scmp.ne.s32.totalorder %s125, %s126
      %p138 = scmp.eq.s32.totalorder %s27, 1
      %p139 = por %p137, %p138
      %p141 = scmp.ne.s32.totalorder %s126, %s140
      %p142 = scmp.eq.s32.totalorder %s27, 0
      %p143 = por %p141, %p142
      %s145 = sadd.s32 %s144, 1
      %p148 = scmp.eq.s32.totalorder %s21, 1
      %p149 = scmp.ne.s32.totalorder %s144, %s146
      %p150 = scmp.eq.s32.totalorder %s21, 0
      %p151 = por %p149, %p150
      %p152 = scmp.ne.s32.totalorder %s144, %s146
      %p153 = scmp.eq.s32.totalorder %s26, 1
      %p154 = por %p152, %p153
      %p155 = scmp.ne.s32.totalorder %s146, %s147
      %p156 = scmp.eq.s32.totalorder %s26, 0
      %p157 = por %p155, %p156
      %p158 = scmp.ne.s32.totalorder %s146, %s147
      %p159 = scmp.eq.s32.totalorder %s27, 1
      %p160 = por %p158, %p159
      %p162 = scmp.ne.s32.totalorder %s147, %s161
      %p163 = scmp.eq.s32.totalorder %s27, 0
      %p164 = por %p162, %p163
      %s166 = sadd.s32 %s165, 1
      %p169 = scmp.eq.s32.totalorder %s21, 1
      %p170 = scmp.ne.s32.totalorder %s165, %s167
      %p171 = scmp.eq.s32.totalorder %s21, 0
      %p172 = por %p170, %p171
      %p173 = scmp.ne.s32.totalorder %s165, %s167
      %p174 = scmp.eq.s32.totalorder %s26, 1
      %p175 = por %p173, %p174
      %p176 = scmp.ne.s32.totalorder %s167, %s168
      %p177 = scmp.eq.s32.totalorder %s26, 0
      %p178 = por %p176, %p177
      %p179 = scmp.ne.s32.totalorder %s167, %s168
      %p180 = scmp.eq.s32.totalorder %s27, 1
      %p181 = por %p179, %p180
      %p183 = scmp.ne.s32.totalorder %s168, %s182
      %p184 = scmp.eq.s32.totalorder %s27, 0
      %p185 = por %p183, %p184
      %s187 = sadd.s32 %s186, 1
      %p190 = scmp.eq.s32.totalorder %s21, 1
      %p191 = scmp.ne.s32.totalorder %s186, %s188
      %p192 = scmp.eq.s32.totalorder %s21, 0
      %p193 = por %p191, %p192
      %p194 = scmp.ne.s32.totalorder %s186, %s188
      %p195 = scmp.eq.s32.totalorder %s26, 1
      %p196 = por %p194, %p195
      %p197 = scmp.ne.s32.totalorder %s188, %s189
      %p198 = scmp.eq.s32.totalorder %s26, 0
      %p199 = por %p197, %p198
      %p200 = scmp.ne.s32.totalorder %s188, %s189
      %p201 = scmp.eq.s32.totalorder %s27, 1
      %p202 = por %p200, %p201
      %p204 = scmp.ne.s32.totalorder %s189, %s203
      %p205 = scmp.eq.s32.totalorder %s27, 0
      %p206 = por %p204, %p205
      %s208 = sadd.s32 %s207, 1
      %p211 = scmp.eq.s32.totalorder %s21, 1
      %p212 = scmp.ne.s32.totalorder %s207, %s209
      %p213 = scmp.eq.s32.totalorder %s21, 0
      %p214 = por %p212, %p213
      %p215 = scmp.ne.s32.totalorder %s207, %s209
      %p216 = scmp.eq.s32.totalorder %s26, 1
      %p217 = por %p215, %p216
      %p218 = scmp.ne.s32.totalorder %s209, %s210
      %p219 = scmp.eq.s32.totalorder %s26, 0
      %p220 = por %p218, %p219
      %p221 = scmp.ne.s32.totalorder %s209, %s210
      %p222 = scmp.eq.s32.totalorder %s27, 1
      %p223 = por %p221, %p222
      %p225 = scmp.ne.s32.totalorder %s210, %s224
      %p226 = scmp.eq.s32.totalorder %s27, 0
      %p227 = por %p225, %p226
      %s229 = sadd.s32 %s228, 1
      %p232 = scmp.eq.s32.totalorder %s21, 1
      %p233 = scmp.ne.s32.totalorder %s228, %s230
      %p234 = scmp.eq.s32.totalorder %s21, 0
      %p235 = por %p233, %p234
      %p236 = scmp.ne.s32.totalorder %s228, %s230
      %p237 = scmp.eq.s32.totalorder %s26, 1
      %p238 = por %p236, %p237
      %p239 = scmp.ne.s32.totalorder %s230, %s231
      %p240 = scmp.eq.s32.totalorder %s26, 0
      %p241 = por %p239, %p240
      %p242 = scmp.ne.s32.totalorder %s230, %s231
      %p243 = scmp.eq.s32.totalorder %s27, 1
      %p244 = por %p242, %p243
      %p246 = scmp.ne.s32.totalorder %s231, %s245
      %p247 = scmp.eq.s32.totalorder %s27, 0
      %p248 = por %p246, %p247
      %s250 = sadd.s32 %s249, 1
      %p253 = scmp.eq.s32.totalorder %s21, 1
      %p254 = scmp.ne.s32.totalorder %s249, %s251
      %p255 = scmp.eq.s32.totalorder %s21, 0
      %p256 = por %p254, %p255
      %p257 = scmp.ne.s32.totalorder %s249, %s251
      %p258 = scmp.eq.s32.totalorder %s26, 1
      %p259 = por %p257, %p258
      %p260 = scmp.ne.s32.totalorder %s251, %s252
      %p261 = scmp.eq.s32.totalorder %s26, 0
      %p262 = por %p260, %p261
      %p263 = scmp.ne.s32.totalorder %s251, %s252
      %p264 = scmp.eq.s32.totalorder %s27, 1
      %p265 = por %p263, %p264
      %p267 = scmp.ne.s32.totalorder %s252, %s266
      %p268 = scmp.eq.s32.totalorder %s27, 0
      %p269 = por %p267, %p268
      %s271 = sadd.s32 %s270, 1
      %p274 = scmp.eq.s32.totalorder %s21, 1
      %p275 = scmp.ne.s32.totalorder %s270, %s272
      %p276 = scmp.eq.s32.totalorder %s21, 0
      %p277 = por %p275, %p276
      %p278 = scmp.ne.s32.totalorder %s270, %s272
      %p279 = scmp.eq.s32.totalorder %s26, 1
      %p280 = por %p278, %p279
      %p281 = scmp.ne.s32.totalorder %s272, %s273
      %p282 = scmp.eq.s32.totalorder %s26, 0
      %p283 = por %p281, %p282
      %p284 = scmp.ne.s32.totalorder %s272, %s273
      %p285 = scmp.eq.s32.totalorder %s27, 1
      %p286 = por %p284, %p285
      %p288 = scmp.ne.s32.totalorder %s273, %s287
      %p289 = scmp.eq.s32.totalorder %s27, 0
      %p290 = por %p288, %p289
      %s291 = ssub.s32 %s21, %s28
      %p292 = scmp.eq.s32.totalorder %s291, 0
      %s294 = sadd.s32 %s293, 1
      %s295 = scalar_select %p292, %s293, %s294
      %p298 = pneg %p292
      %p299 = scmp.eq.s32.totalorder %s21, 1
      %p300 = por %p298, %p299
      %p301 = scmp.ne.s32.totalorder %s293, %s296
      %p302 = scmp.eq.s32.totalorder %s21, 0
      %p303 = por %p301, %p302
      %p304 = scmp.ne.s32.totalorder %s293, %s296
      %p305 = scmp.eq.s32.totalorder %s26, 1
      %p306 = por %p304, %p305
      %p307 = scmp.ne.s32.totalorder %s296, %s297
      %p308 = scmp.eq.s32.totalorder %s26, 0
      %p309 = por %p307, %p308
      %p310 = scmp.ne.s32.totalorder %s296, %s297
      %p311 = scmp.eq.s32.totalorder %s27, 1
      %p312 = por %p310, %p311
      %p314 = scmp.ne.s32.totalorder %s297, %s313
      %p315 = scmp.eq.s32.totalorder %s27, 0
      %p316 = por %p314, %p315
      %p317 = scmp.le.s32.totalorder 1, %s21
      %p318 = scmp.lt.s32.totalorder %s21, 3
      %p319 = pnand %p317, %p318
      %p320 = pneg %p319
      // Predicated region
      $region9: #{tpu_custom_call.1} parent=5 // pred_check
        _
      $region10: #{tpu_custom_call.1} parent=5 // pred_check_branch
        %322 = sbr.rel (%p319) target = $region12
      $region11: #{tpu_custom_call.1} parent=5 // pred_region
        %s323 = ssub.s32 %s21, 1
        // Predicated region
        $region13: #{tpu_custom_call.1} parent=11 // pred_check
          %p324 = pneg %p94
        $region14: #{tpu_custom_call.1} parent=11 // pred_check_branch
          %326 = sbr.rel (%p324) target = $region16
        $region15: #{tpu_custom_call.1} parent=11 // pred_region
          _
        $region16: #{tpu_custom_call.1} parent=11 // pred_fallthru
          _
        // Predicated region
        $region17: #{tpu_custom_call.1} parent=11 // pred_check
          %p327 = pneg %p115
        $region18: #{tpu_custom_call.1} parent=11 // pred_check_branch
          %329 = sbr.rel (%p327) target = $region20
        $region19: #{tpu_custom_call.1} parent=11 // pred_region
          _
        $region20: #{tpu_custom_call.1} parent=11 // pred_fallthru
          _
        // Predicated region
        $region21: #{tpu_custom_call.1} parent=11 // pred_check
          %p330 = pneg %p136
        $region22: #{tpu_custom_call.1} parent=11 // pred_check_branch
          %332 = sbr.rel (%p330) target = $region24
        $region23: #{tpu_custom_call.1} parent=11 // pred_region
          _
        $region24: #{tpu_custom_call.1} parent=11 // pred_fallthru
          _
        // Predicated region
        $region25: #{tpu_custom_call.1} parent=11 // pred_check
          %p333 = pneg %p157
        $region26: #{tpu_custom_call.1} parent=11 // pred_check_branch
          %335 = sbr.rel (%p333) target = $region28
        $region27: #{tpu_custom_call.1} parent=11 // pred_region
          _
        $region28: #{tpu_custom_call.1} parent=11 // pred_fallthru
          _
        // Predicated region
        $region29: #{tpu_custom_call.1} parent=11 // pred_check
          %p336 = pneg %p178
        $region30: #{tpu_custom_call.1} parent=11 // pred_check_branch
          %338 = sbr.rel (%p336) target = $region32
        $region31: #{tpu_custom_call.1} parent=11 // pred_region
          _
        $region32: #{tpu_custom_call.1} parent=11 // pred_fallthru
          _
        // Predicated region
        $region33: #{tpu_custom_call.1} parent=11 // pred_check
          %p339 = pneg %p199
        $region34: #{tpu_custom_call.1} parent=11 // pred_check_branch
          %341 = sbr.rel (%p339) target = $region36
        $region35: #{tpu_custom_call.1} parent=11 // pred_region
          _
        $region36: #{tpu_custom_call.1} parent=11 // pred_fallthru
          _
        // Predicated region
        $region37: #{tpu_custom_call.1} parent=11 // pred_check
          %p342 = pneg %p220
        $region38: #{tpu_custom_call.1} parent=11 // pred_check_branch
          %344 = sbr.rel (%p342) target = $region40
        $region39: #{tpu_custom_call.1} parent=11 // pred_region
          _
        $region40: #{tpu_custom_call.1} parent=11 // pred_fallthru
          _
        // Predicated region
        $region41: #{tpu_custom_call.1} parent=11 // pred_check
          %p345 = pneg %p241
        $region42: #{tpu_custom_call.1} parent=11 // pred_check_branch
          %347 = sbr.rel (%p345) target = $region44
        $region43: #{tpu_custom_call.1} parent=11 // pred_region
          _
        $region44: #{tpu_custom_call.1} parent=11 // pred_fallthru
          _
        // Predicated region
        $region45: #{tpu_custom_call.1} parent=11 // pred_check
          %p348 = pneg %p262
        $region46: #{tpu_custom_call.1} parent=11 // pred_check_branch
          %350 = sbr.rel (%p348) target = $region48
        $region47: #{tpu_custom_call.1} parent=11 // pred_region
          _
        $region48: #{tpu_custom_call.1} parent=11 // pred_fallthru
          _
        // Predicated region
        $region49: #{tpu_custom_call.1} parent=11 // pred_check
          %p351 = pneg %p283
        $region50: #{tpu_custom_call.1} parent=11 // pred_check_branch
          %353 = sbr.rel (%p351) target = $region52
        $region51: #{tpu_custom_call.1} parent=11 // pred_region
          _
        $region52: #{tpu_custom_call.1} parent=11 // pred_fallthru
          _
      $region12: #{tpu_custom_call.1} parent=5 // pred_fallthru
        _
      %p354 = scmp.lt.s32.totalorder %s21, 2
      // Predicated region
      $region53: #{tpu_custom_call.1} parent=5 // pred_check
        %p355 = pneg %p354
      $region54: #{tpu_custom_call.1} parent=5 // pred_check_branch
        %357 = sbr.rel (%p355) target = $region56
      $region55: #{tpu_custom_call.1} parent=5 // pred_region
        // Predicated region
        $region57: #{tpu_custom_call.1} parent=55 // pred_check
          %p358 = pneg %p41
        $region58: #{tpu_custom_call.1} parent=55 // pred_check_branch
          %360 = sbr.rel (%p358) target = $region60
        $region59: #{tpu_custom_call.1} parent=55 // pred_region
          %p361 = scmp.lt.s32.totalorder %s21, 1
          %s362 = scalar_select %p361, %s21, 1
          %s363 = smul.addr %s362, 8
          %s364 = scalar_lea.vmem %s0, %s363
        $region60: #{tpu_custom_call.1} parent=55 // pred_fallthru
          _
        // Predicated region
        $region61: #{tpu_custom_call.1} parent=55 // pred_check
          %p365 = pneg %p67
        $region62: #{tpu_custom_call.1} parent=55 // pred_check_branch
          %367 = sbr.rel (%p365) target = $region64
        $region63: #{tpu_custom_call.1} parent=55 // pred_region
          %p368 = scmp.lt.s32.totalorder %s21, 1
          %s369 = scalar_select %p368, %s21, 1
          %s370 = smul.addr %s369, 8
          %s371 = scalar_lea.vmem %s1, %s370
        $region64: #{tpu_custom_call.1} parent=55 // pred_fallthru
          _
      $region56: #{tpu_custom_call.1} parent=5 // pred_fallthru
        _
      %p372 = scmp.le.s32.totalorder 1, %s21
      %p373 = scmp.lt.s32.totalorder %s21, 3
      %p374 = pnand %p372, %p373
      %p375 = pneg %p374
      // Predicated region
      $region65: #{tpu_custom_call.1} parent=5 // pred_check
        _
      $region66: #{tpu_custom_call.1} parent=5 // pred_check_branch
        %377 = sbr.rel (%p374) target = $region68
      $region67: #{tpu_custom_call.1} parent=5 // pred_region
        %s378 = ssub.s32 %s21, 1
        %p379 = scmp.lt.s32.totalorder %s26, 1
        %s380 = scalar_select %p379, %s26, 1
        %s381 = smul.addr %s380, 8
        %s382 = scalar_lea.vmem %s0, %s381
        %p383 = pneg %p47
        %p384 = pneg %p44
        %p385 = scmp.lt.s32.totalorder %s26, 1
        %s386 = scalar_select %p385, %s26, 1
        %s387 = smul.addr %s386, 8
        %s388 = scalar_lea.vmem %s1, %s387
        %p389 = pneg %p73
        %p390 = pneg %p70
        %p391 = pneg %p94
        %p392 = pneg %p91
        %p393 = pneg %p115
        %p394 = pneg %p112
        %p395 = pneg %p136
        %p396 = pneg %p133
        %p397 = pneg %p157
        %p398 = pneg %p154
        %p399 = pneg %p178
        %p400 = pneg %p175
        %p401 = pneg %p199
        %p402 = pneg %p196
        %p403 = pneg %p220
        %p404 = pneg %p217
        %p405 = pneg %p241
        %p406 = pneg %p238
        %p407 = pneg %p262
        %p408 = pneg %p259
        %p409 = pneg %p283
        %p410 = pneg %p280
        %p411 = pneg %p309
        %p412 = pneg %p306
        %s413 = sand.u32 %s296, 1
        %s414 = scalar_lea.sflag [#allocation3], %s413
        %s415 = sand.u32 %s296, 1
        %s416 = smul.addr %s415, 8
        %s417 = scalar_lea.vmem [#allocation2], %s416
        %p418 = scmp.lt.s32.totalorder %s26, 1
        %s419 = scalar_select %p418, %s26, 1
        %s420 = smul.addr %s419, 8
        %s421 = scalar_lea.vmem %s0, %s420
        %p422 = scmp.lt.s32.totalorder %s26, 1
        %s423 = scalar_select %p422, %s26, 1
        %s424 = smul.addr %s423, 8
        %s425 = scalar_lea.vmem %s1, %s424
        %v426 = vld [vmem:[%s421] sm:$0xff]
        %v427 = vld [vmem:[%s11] sm:$0xff]
        %v428 = vld [vmem:[%s11 + $0x8] sm:$0x1]
        %v429 = vld [vmem:[%s4] sm:$0xff]
        %v430 = vld [vmem:[%s4 + $0x8] sm:$0xff]
        %v431 = vld [vmem:[%s4 + $0x10] sm:$0xff]
        %v432 = vld [vmem:[%s4 + $0x18] sm:$0xff]
        %v433 = vld [vmem:[%s4 + $0x20] sm:$0xff]
        %v434 = vld [vmem:[%s4 + $0x28] sm:$0xff]
        %v435 = vld [vmem:[%s4 + $0x30] sm:$0xff]
        %v436 = vld [vmem:[%s4 + $0x38] sm:$0xff]
        %v437 = vld [vmem:[%s4 + $0x40] sm:$0xff]
        %v438 = vld [vmem:[%s4 + $0x48] sm:$0xff]
        %v439 = vld [vmem:[%s4 + $0x50] sm:$0xff]
        %v440 = vld [vmem:[%s4 + $0x58] sm:$0xff]
        %v441 = vld [vmem:[%s4 + $0x60] sm:$0xff]
        %v442 = vld [vmem:[%s4 + $0x68] sm:$0xff]
        %v443 = vld [vmem:[%s4 + $0x70] sm:$0xff]
        %v444 = vld [vmem:[%s4 + $0x78] sm:$0xff]
        %v445 = vld [vmem:[%s5] sm:$0xff]
        %v446 = vld [vmem:[%s5 + $0x8] sm:$0xff]
        %v447 = vld [vmem:[%s6] sm:$0xff]
        %v448 = vld [vmem:[%s6 + $0x8] sm:$0xff]
        %v449 = vld [vmem:[%s2] sm:$0xff]
        %v450 = vld [vmem:[%s2 + $0x8] sm:$0xff]
        %v451 = vld [vmem:[%s2 + $0x10] sm:$0xff]
        %v452 = vld [vmem:[%s2 + $0x18] sm:$0xff]
        %vm453 = vcmask 261120
        %v455 = vsel %vm453, %v426, 0
        %457 = vmatpush.msra.mxu0 0.0
        %458 = vmatpush.msra.mxu0 0.0
        %459 = vmatpush.msra.mxu0 0.0
        %460 = vmatpush.msra.mxu0 0.0
        %461 = vmatpush.msra.mxu0 0.0
        %462 = vmatpush.msra.mxu0 0.0
        %463 = vmatpush.msra.mxu0 0.0
        %464 = vmatpush.msra.mxu0 0.0
        %465 = vmatpush.msra.mxu0 0.0
        %466 = vmatpush.msra.mxu0 0.0
        %467 = vmatpush.msra.mxu0 0.0
        %468 = vmatpush.msra.mxu0 0.0
        %469 = vmatpush.msra.mxu0 %v452
        %470 = vmatpush.msra.mxu0 %v451
        %471 = vmatpush.msra.mxu0 %v450
        %472 = vmatpush.msra.mxu0 %v449
        %473 = vmatmul.f32.gmra.mxu0 %v455
        %v474 = vpop.f32.mrf.mxu0
        %v475 = vadd.f32 0.0, %v474
        %476 = vdwg.mxu0
        %478 = vrot.lane.b32.xlu0 %v475, 32
        %v479 = vpop.permute.xlu0 %478
        %481 = vrot.lane.b32.xlu0 %v475, 64
        %v482 = vpop.permute.xlu0 %481
        %484 = vrot.lane.b32.xlu0 %v475, 96
        %v485 = vpop.permute.xlu0 %484
        %v487 = vsel %vm453, %v475, %v479
        %vm488 = vcmask 523264
        %v489 = vsel %vm488, %v487, %v482
        %vm490 = vcmask 785408
        %v491 = vsel %vm490, %v489, %v485
        %492 = vrot.lane.b32.xlu0 %v475, 8
        %v493 = vpop.permute.xlu0 %492
        %495 = vrot.lane.b32.xlu0 %v475, 16
        %v496 = vpop.permute.xlu0 %495
        %498 = vrot.lane.b32.xlu0 %v475, 24
        %v499 = vpop.permute.xlu0 %498
        %501 = vrot.lane.b32.xlu0 %v475, 40
        %v502 = vpop.permute.xlu0 %501
        %504 = vrot.lane.b32.xlu0 %v475, 48
        %v505 = vpop.permute.xlu0 %504
        %507 = vrot.lane.b32.xlu0 %v475, 56
        %v508 = vpop.permute.xlu0 %507
        %510 = vrot.lane.b32.xlu0 %v475, 72
        %v511 = vpop.permute.xlu0 %510
        %513 = vrot.lane.b32.xlu0 %v475, 80
        %v514 = vpop.permute.xlu0 %513
        %516 = vrot.lane.b32.xlu0 %v475, 88
        %v517 = vpop.permute.xlu0 %516
        %vm519 = vcmask 64512
        %v520 = vsel %vm519, %v475, %v493
        %vm521 = vcmask 130048
        %v522 = vsel %vm521, %v520, %v496
        %vm523 = vcmask 195584
        %v524 = vsel %vm523, %v522, %v499
        %v525 = vsel %vm453, %v524, %v499
        %vm526 = vcmask 326656
        %v527 = vsel %vm526, %v525, %v479
        %vm528 = vcmask 392192
        %v529 = vsel %vm528, %v527, %v502
        %vm530 = vcmask 457728
        %v531 = vsel %vm530, %v529, %v505
        %v532 = vsel %vm488, %v531, %v505
        %vm533 = vcmask 588800
        %v534 = vsel %vm533, %v532, %v508
        %vm535 = vcmask 654336
        %v536 = vsel %vm535, %v534, %v482
        %vm537 = vcmask 719872
        %v538 = vsel %vm537, %v536, %v511
        %v539 = vsel %vm490, %v538, %v511
        %vm540 = vcmask 850944
        %v541 = vsel %vm540, %v539, %v514
        %vm542 = vcmask 916480
        %v543 = vsel %vm542, %v541, %v517
        %vm544 = vcmask 982016
        %v545 = vsel %vm544, %v543, %v485
        %v546 = vld [vmem:[%s7] sm:$0xff]
        %v547 = vld [vmem:[%s7 + $0x8] sm:$0xff]
        %v548 = vld [vmem:[%s7 + $0x10] sm:$0xff]
        %v549 = vld [vmem:[%s7 + $0x18] sm:$0xff]
        %v550 = vld [vmem:[%s7 + $0x20] sm:$0xff]
        %v551 = vld [vmem:[%s7 + $0x28] sm:$0xff]
        %v552 = vld [vmem:[%s7 + $0x30] sm:$0xff]
        %v553 = vld [vmem:[%s7 + $0x38] sm:$0xff]
        %v554 = vld [vmem:[%s7 + $0x40] sm:$0xff]
        %v555 = vld [vmem:[%s7 + $0x48] sm:$0xff]
        %v556 = vld [vmem:[%s7 + $0x50] sm:$0xff]
        %v557 = vld [vmem:[%s7 + $0x58] sm:$0xff]
        %v558 = vld [vmem:[%s7 + $0x60] sm:$0xff]
        %v559 = vld [vmem:[%s7 + $0x68] sm:$0xff]
        %v560 = vld [vmem:[%s7 + $0x70] sm:$0xff]
        %v561 = vld [vmem:[%s7 + $0x78] sm:$0xff]
        %v562 = vmul.f32 %v545, %v491
        %563 = vmatpush.msra.mxu0 %v444
        %564 = vmatpush.msra.mxu0 %v443
        %565 = vmatpush.msra.mxu0 %v442
        %566 = vmatpush.msra.mxu0 %v441
        %567 = vmatpush.msra.mxu0 %v440
        %568 = vmatpush.msra.mxu0 %v439
        %569 = vmatpush.msra.mxu0 %v438
        %570 = vmatpush.msra.mxu0 %v437
        %571 = vmatpush.msra.mxu0 %v436
        %572 = vmatpush.msra.mxu0 %v435
        %573 = vmatpush.msra.mxu0 %v434
        %574 = vmatpush.msra.mxu0 %v433
        %575 = vmatpush.msra.mxu0 %v432
        %576 = vmatpush.msra.mxu0 %v431
        %577 = vmatpush.msra.mxu0 %v430
        %578 = vmatpush.msra.mxu0 %v429
        %579 = vmatmul.f32.gmra.mxu0 %v562
        %v580 = vpop.f32.mrf.mxu0
        %v581 = vadd.f32 0.0, %v580
        %582 = vdwg.mxu0
        %v583 = vperm.slane %v427, 0
        %v584 = vmul.f32 %v581, %v583
        %v585 = vsel %vm521, %v584, -inf
        %586 = vmax.xlane.f32.xlu0 %v585
        %v587 = vpop.xlane.xlu0 %586
        %v588 = vsub.f32 %v584, %v587
        %v589 = vmul.f32 %v588, 1.442695
        %v590 = vpow.pop %v589
        %v592 = vsel %vm521, %v590, 0
        %594 = vmatpush.msra.mxu0 0.0
        %595 = vmatpush.msra.mxu0 0.0
        %596 = vmatpush.msra.mxu0 0.0
        %597 = vmatpush.msra.mxu0 0.0
        %598 = vmatpush.msra.mxu0 0.0
        %599 = vmatpush.msra.mxu0 0.0
        %600 = vmatpush.msra.mxu0 0.0
        %601 = vmatpush.msra.mxu0 0.0
        %602 = vmatpush.msra.mxu0 0.0
        %603 = vmatpush.msra.mxu0 0.0
        %604 = vmatpush.msra.mxu0 0.0
        %605 = vmatpush.msra.mxu0 0.0
        %606 = vmatpush.msra.mxu0 0.0
        %607 = vmatpush.msra.mxu0 0.0
        %608 = vmatpush.msra.mxu0 %v446
        %609 = vmatpush.msra.mxu0 %v445
        %610 = vmatmul.f32.gmra.mxu0 %v592
        %v611 = vpop.f32.mrf.mxu0
        %v612 = vadd.f32 0.0, %v611
        %613 = vdwg.mxu0
        %v614 = vrcp.pop %v612
        %v615 = vmul.f32 %v612, %v614
        %v616 = vsub.f32 2.0, %v615
        %v617 = vmul.f32 %v614, %v616
        %v618 = vmul.f32 %v590, %v617
        %v620 = vsel %vm521, %v618, 0
        %622 = vmatpush.msra.mxu0 0.0
        %623 = vmatpush.msra.mxu0 0.0
        %624 = vmatpush.msra.mxu0 0.0
        %625 = vmatpush.msra.mxu0 0.0
        %626 = vmatpush.msra.mxu0 0.0
        %627 = vmatpush.msra.mxu0 0.0
        %628 = vmatpush.msra.mxu0 0.0
        %629 = vmatpush.msra.mxu0 0.0
        %630 = vmatpush.msra.mxu0 0.0
        %631 = vmatpush.msra.mxu0 0.0
        %632 = vmatpush.msra.mxu0 0.0
        %633 = vmatpush.msra.mxu0 0.0
        %634 = vmatpush.msra.mxu0 0.0
        %635 = vmatpush.msra.mxu0 0.0
        %636 = vmatpush.msra.mxu0 %v448
        %637 = vmatpush.msra.mxu0 %v447
        %638 = vmatmul.f32.gmra.mxu0 %v620
        %v639 = vpop.f32.mrf.mxu0
        %v640 = vadd.f32 0.0, %v639
        %641 = vdwg.mxu0
        %v642 = vmul.f32 %v640, %v491
        %643 = vmatpush.msra.mxu0 %v561
        %644 = vmatpush.msra.mxu0 %v560
        %645 = vmatpush.msra.mxu0 %v559
        %646 = vmatpush.msra.mxu0 %v558
        %647 = vmatpush.msra.mxu0 %v557
        %648 = vmatpush.msra.mxu0 %v556
        %649 = vmatpush.msra.mxu0 %v555
        %650 = vmatpush.msra.mxu0 %v554
        %651 = vmatpush.msra.mxu0 %v553
        %652 = vmatpush.msra.mxu0 %v552
        %653 = vmatpush.msra.mxu0 %v551
        %654 = vmatpush.msra.mxu0 %v550
        %655 = vmatpush.msra.mxu0 %v549
        %656 = vmatpush.msra.mxu0 %v548
        %657 = vmatpush.msra.mxu0 %v547
        %658 = vmatpush.msra.mxu0 %v546
        %659 = vmatmul.f32.gmra.mxu0 %v642
        %v660 = vpop.f32.mrf.mxu0
        %v661 = vadd.f32 0.0, %v660
        %662 = vdwg.mxu0
        %v663 = vadd.f32 %v426, %v661
        %v664 = vsel %vm453, %v663, 0.0
        %665 = vadd.xlane.f32.xlu0 %v664
        %v666 = vpop.xlane.xlu0 %665
        %v667 = vrcp.pop 32.0
        %v668 = vmul.f32 32.0, %v667
        %v669 = vsub.f32 1.0, %v668
        %v670 = vmul.f32 %v667, %v669
        %v671 = vadd.f32 %v667, %v670
        %vm672 = vweird.f32 %v667
        %v673 = vsel %vm672, %v667, %v671
        %v674 = vmul.f32 %v666, %v673
        %v675 = vsub.f32 %v663, %v674
        %v676 = vmul.f32 %v675, %v675
        %v677 = vsel %vm453, %v676, 0.0
        %678 = vadd.xlane.f32.xlu0 %v677
        %v679 = vpop.xlane.xlu0 %678
        %v680 = vmul.f32 %v679, %v673
        %v681 = vadd.f32 %v680, 1e-05
        %v682 = vrsqrt.pop %v681
        %v683 = vmul.f32 %v682, %v681
        %v684 = vmul.f32 %v683, %v682
        %v685 = vmul.f32 0.5, %v684
        %v686 = vsub.f32 1.5, %v685
        %v687 = vmul.f32 %v682, %v686
        %vm688 = vweird.f32 %v681
        %vm689 = vweird.f32 %v682
        %vm690 = vmor %vm688, %vm689
        %v691 = vsel %vm690, %v682, %v687
        %v692 = vmul.f32 %v675, %v691
        %v693 = vperm.slane %v427, 3
        %v694 = vmul.f32 %v692, %v693
        %v695 = vperm.slane %v427, 4
        %v696 = vadd.f32 %v694, %v695
        %v697 = vld [vmem:[%s425] sm:$0xff]
        %v698 = vld [vmem:[%s3] sm:$0xff]
        %v699 = vld [vmem:[%s3 + $0x8] sm:$0xff]
        %v700 = vld [vmem:[%s3 + $0x10] sm:$0xff]
        %v701 = vld [vmem:[%s3 + $0x18] sm:$0xff]
        %v703 = vsel %vm453, %v697, 0
        %705 = vmatpush.msra.mxu0 0.0
        %706 = vmatpush.msra.mxu0 0.0
        %707 = vmatpush.msra.mxu0 0.0
        %708 = vmatpush.msra.mxu0 0.0
        %709 = vmatpush.msra.mxu0 0.0
        %710 = vmatpush.msra.mxu0 0.0
        %711 = vmatpush.msra.mxu0 0.0
        %712 = vmatpush.msra.mxu0 0.0
        %713 = vmatpush.msra.mxu0 0.0
        %714 = vmatpush.msra.mxu0 0.0
        %715 = vmatpush.msra.mxu0 0.0
        %716 = vmatpush.msra.mxu0 0.0
        %717 = vmatpush.msra.mxu0 %v701
        %718 = vmatpush.msra.mxu0 %v700
        %719 = vmatpush.msra.mxu0 %v699
        %720 = vmatpush.msra.mxu0 %v698
        %721 = vmatmul.f32.gmra.mxu0 %v703
        %v722 = vpop.f32.mrf.mxu0
        %v723 = vadd.f32 0.0, %v722
        %724 = vdwg.mxu0
        %725 = vmatpush.msra.mxu0 0.0
        %726 = vmatpush.msra.mxu0 0.0
        %727 = vmatpush.msra.mxu0 0.0
        %728 = vmatpush.msra.mxu0 0.0
        %729 = vmatpush.msra.mxu0 0.0
        %730 = vmatpush.msra.mxu0 0.0
        %731 = vmatpush.msra.mxu0 0.0
        %732 = vmatpush.msra.mxu0 0.0
        %733 = vmatpush.msra.mxu0 0.0
        %734 = vmatpush.msra.mxu0 0.0
        %735 = vmatpush.msra.mxu0 0.0
        %736 = vmatpush.msra.mxu0 0.0
        %737 = vmatpush.msra.mxu0 %v701
        %738 = vmatpush.msra.mxu0 %v700
        %739 = vmatpush.msra.mxu0 %v699
        %740 = vmatpush.msra.mxu0 %v698
        %741 = vmatmul.f32.gmra.mxu0 %v455
        %v742 = vpop.f32.mrf.mxu0
        %v743 = vadd.f32 0.0, %v742
        %744 = vdwg.mxu0
        %746 = vrot.lane.b32.xlu0 %v723, 8
        %v747 = vpop.permute.xlu0 %746
        %749 = vrot.lane.b32.xlu0 %v723, 16
        %v750 = vpop.permute.xlu0 %749
        %752 = vrot.lane.b32.xlu0 %v723, 24
        %v753 = vpop.permute.xlu0 %752
        %755 = vrot.lane.b32.xlu0 %v723, 32
        %v756 = vpop.permute.xlu0 %755
        %758 = vrot.lane.b32.xlu0 %v723, 40
        %v759 = vpop.permute.xlu0 %758
        %761 = vrot.lane.b32.xlu0 %v723, 48
        %v762 = vpop.permute.xlu0 %761
        %764 = vrot.lane.b32.xlu0 %v723, 56
        %v765 = vpop.permute.xlu0 %764
        %767 = vrot.lane.b32.xlu0 %v723, 64
        %v768 = vpop.permute.xlu0 %767
        %770 = vrot.lane.b32.xlu0 %v723, 72
        %v771 = vpop.permute.xlu0 %770
        %773 = vrot.lane.b32.xlu0 %v723, 80
        %v774 = vpop.permute.xlu0 %773
        %776 = vrot.lane.b32.xlu0 %v723, 88
        %v777 = vpop.permute.xlu0 %776
        %779 = vrot.lane.b32.xlu0 %v723, 96
        %v780 = vpop.permute.xlu0 %779
        %v782 = vsel %vm519, %v723, %v747
        %v783 = vsel %vm521, %v782, %v750
        %v784 = vsel %vm523, %v783, %v753
        %v785 = vsel %vm453, %v784, %v753
        %v786 = vsel %vm526, %v785, %v756
        %v787 = vsel %vm528, %v786, %v759
        %v788 = vsel %vm530, %v787, %v762
        %v789 = vsel %vm488, %v788, %v762
        %v790 = vsel %vm533, %v789, %v765
        %v791 = vsel %vm535, %v790, %v768
        %v792 = vsel %vm537, %v791, %v771
        %v793 = vsel %vm490, %v792, %v771
        %v794 = vsel %vm540, %v793, %v774
        %v795 = vsel %vm542, %v794, %v777
        %v796 = vsel %vm544, %v795, %v780
        %v797 = vsel %vm453, %v723, %v756
        %v798 = vsel %vm488, %v797, %v768
        %v799 = vsel %vm490, %v798, %v780
        %801 = vrot.lane.b32.xlu0 %v743, 32
        %v802 = vpop.permute.xlu0 %801
        %804 = vrot.lane.b32.xlu0 %v743, 64
        %v805 = vpop.permute.xlu0 %804
        %807 = vrot.lane.b32.xlu0 %v743, 96
        %v808 = vpop.permute.xlu0 %807
        %v810 = vsel %vm453, %v743, %v802
        %v811 = vsel %vm488, %v810, %v805
        %v812 = vsel %vm490, %v811, %v808
        %v813 = vld [vmem:[%s8] sm:$0xff]
        %v814 = vld [vmem:[%s8 + $0x8] sm:$0xff]
        %v815 = vld [vmem:[%s8 + $0x10] sm:$0xff]
        %v816 = vld [vmem:[%s8 + $0x18] sm:$0xff]
        %v817 = vld [vmem:[%s8 + $0x20] sm:$0xff]
        %v818 = vld [vmem:[%s8 + $0x28] sm:$0xff]
        %v819 = vld [vmem:[%s8 + $0x30] sm:$0xff]
        %v820 = vld [vmem:[%s8 + $0x38] sm:$0xff]
        %v821 = vld [vmem:[%s8 + $0x40] sm:$0xff]
        %v822 = vld [vmem:[%s8 + $0x48] sm:$0xff]
        %v823 = vld [vmem:[%s8 + $0x50] sm:$0xff]
        %v824 = vld [vmem:[%s8 + $0x58] sm:$0xff]
        %v825 = vld [vmem:[%s8 + $0x60] sm:$0xff]
        %v826 = vld [vmem:[%s8 + $0x68] sm:$0xff]
        %v827 = vld [vmem:[%s8 + $0x70] sm:$0xff]
        %v828 = vld [vmem:[%s8 + $0x78] sm:$0xff]
        %v829 = vmul.f32 %v796, %v799
        %830 = vmatpush.msra.mxu0 %v444
        %831 = vmatpush.msra.mxu0 %v443
        %832 = vmatpush.msra.mxu0 %v442
        %833 = vmatpush.msra.mxu0 %v441
        %834 = vmatpush.msra.mxu0 %v440
        %835 = vmatpush.msra.mxu0 %v439
        %836 = vmatpush.msra.mxu0 %v438
        %837 = vmatpush.msra.mxu0 %v437
        %838 = vmatpush.msra.mxu0 %v436
        %839 = vmatpush.msra.mxu0 %v435
        %840 = vmatpush.msra.mxu0 %v434
        %841 = vmatpush.msra.mxu0 %v433
        %842 = vmatpush.msra.mxu0 %v432
        %843 = vmatpush.msra.mxu0 %v431
        %844 = vmatpush.msra.mxu0 %v430
        %845 = vmatpush.msra.mxu0 %v429
        %846 = vmatmul.f32.gmra.mxu0 %v829
        %v847 = vpop.f32.mrf.mxu0
        %v848 = vadd.f32 0.0, %v847
        %849 = vdwg.mxu0
        %v850 = vsel %vm521, %v848, -inf
        %851 = vmax.xlane.f32.xlu0 %v850
        %v852 = vpop.xlane.xlu0 %851
        %v853 = vsub.f32 %v848, %v852
        %v854 = vmul.f32 %v853, 1.442695
        %v855 = vpow.pop %v854
        %v857 = vsel %vm521, %v855, 0
        %859 = vmatpush.msra.mxu0 0.0
        %860 = vmatpush.msra.mxu0 0.0
        %861 = vmatpush.msra.mxu0 0.0
        %862 = vmatpush.msra.mxu0 0.0
        %863 = vmatpush.msra.mxu0 0.0
        %864 = vmatpush.msra.mxu0 0.0
        %865 = vmatpush.msra.mxu0 0.0
        %866 = vmatpush.msra.mxu0 0.0
        %867 = vmatpush.msra.mxu0 0.0
        %868 = vmatpush.msra.mxu0 0.0
        %869 = vmatpush.msra.mxu0 0.0
        %870 = vmatpush.msra.mxu0 0.0
        %871 = vmatpush.msra.mxu0 0.0
        %872 = vmatpush.msra.mxu0 0.0
        %873 = vmatpush.msra.mxu0 %v446
        %874 = vmatpush.msra.mxu0 %v445
        %875 = vmatmul.f32.gmra.mxu0 %v857
        %v876 = vpop.f32.mrf.mxu0
        %v877 = vadd.f32 0.0, %v876
        %878 = vdwg.mxu0
        %v879 = vrcp.pop %v877
        %v880 = vmul.f32 %v877, %v879
        %v881 = vsub.f32 2.0, %v880
        %v882 = vmul.f32 %v879, %v881
        %v883 = vmul.f32 %v855, %v882
        %v885 = vsel %vm521, %v883, 0
        %887 = vmatpush.msra.mxu0 0.0
        %888 = vmatpush.msra.mxu0 0.0
        %889 = vmatpush.msra.mxu0 0.0
        %890 = vmatpush.msra.mxu0 0.0
        %891 = vmatpush.msra.mxu0 0.0
        %892 = vmatpush.msra.mxu0 0.0
        %893 = vmatpush.msra.mxu0 0.0
        %894 = vmatpush.msra.mxu0 0.0
        %895 = vmatpush.msra.mxu0 0.0
        %896 = vmatpush.msra.mxu0 0.0
        %897 = vmatpush.msra.mxu0 0.0
        %898 = vmatpush.msra.mxu0 0.0
        %899 = vmatpush.msra.mxu0 0.0
        %900 = vmatpush.msra.mxu0 0.0
        %901 = vmatpush.msra.mxu0 %v448
        %902 = vmatpush.msra.mxu0 %v447
        %903 = vmatmul.f32.gmra.mxu0 %v885
        %v904 = vpop.f32.mrf.mxu0
        %v905 = vadd.f32 0.0, %v904
        %906 = vdwg.mxu0
        %v907 = vmul.f32 %v905, %v812
        %908 = vmatpush.msra.mxu0 %v828
        %909 = vmatpush.msra.mxu0 %v827
        %910 = vmatpush.msra.mxu0 %v826
        %911 = vmatpush.msra.mxu0 %v825
        %912 = vmatpush.msra.mxu0 %v824
        %913 = vmatpush.msra.mxu0 %v823
        %914 = vmatpush.msra.mxu0 %v822
        %915 = vmatpush.msra.mxu0 %v821
        %916 = vmatpush.msra.mxu0 %v820
        %917 = vmatpush.msra.mxu0 %v819
        %918 = vmatpush.msra.mxu0 %v818
        %919 = vmatpush.msra.mxu0 %v817
        %920 = vmatpush.msra.mxu0 %v816
        %921 = vmatpush.msra.mxu0 %v815
        %922 = vmatpush.msra.mxu0 %v814
        %923 = vmatpush.msra.mxu0 %v813
        %924 = vmatmul.f32.gmra.mxu0 %v907
        %v925 = vpop.f32.mrf.mxu0
        %v926 = vadd.f32 0.0, %v925
        %927 = vdwg.mxu0
        %v928 = vadd.f32 %v696, %v926
        %v929 = vsel %vm453, %v928, 0.0
        %930 = vadd.xlane.f32.xlu0 %v929
        %v931 = vpop.xlane.xlu0 %930
        %v932 = vmul.f32 %v931, %v673
        %v933 = vsub.f32 %v928, %v932
        %v934 = vmul.f32 %v933, %v933
        %v935 = vsel %vm453, %v934, 0.0
        %936 = vadd.xlane.f32.xlu0 %v935
        %v937 = vpop.xlane.xlu0 %936
        %v938 = vmul.f32 %v937, %v673
        %v939 = vadd.f32 %v938, 1e-05
        %v940 = vrsqrt.pop %v939
        %v941 = vmul.f32 %v940, %v939
        %v942 = vmul.f32 %v941, %v940
        %v943 = vmul.f32 0.5, %v942
        %v944 = vsub.f32 1.5, %v943
        %v945 = vmul.f32 %v940, %v944
        %vm946 = vweird.f32 %v939
        %vm947 = vweird.f32 %v940
        %vm948 = vmor %vm946, %vm947
        %v949 = vsel %vm948, %v940, %v945
        %v950 = vmul.f32 %v933, %v949
        %v951 = vperm.slane %v427, 5
        %v952 = vmul.f32 %v950, %v951
        %v953 = vperm.slane %v427, 6
        %v954 = vadd.f32 %v952, %v953
        %v955 = vld [vmem:[%s9] sm:$0xff]
        %v956 = vld [vmem:[%s9 + $0x8] sm:$0xff]
        %v957 = vld [vmem:[%s9 + $0x10] sm:$0xff]
        %v958 = vld [vmem:[%s9 + $0x18] sm:$0xff]
        %v959 = vperm.slane %v427, 1
        %v961 = vsel %vm453, %v954, 0
        %963 = vmatpush.msra.mxu0 0.0
        %964 = vmatpush.msra.mxu0 0.0
        %965 = vmatpush.msra.mxu0 0.0
        %966 = vmatpush.msra.mxu0 0.0
        %967 = vmatpush.msra.mxu0 0.0
        %968 = vmatpush.msra.mxu0 0.0
        %969 = vmatpush.msra.mxu0 0.0
        %970 = vmatpush.msra.mxu0 0.0
        %971 = vmatpush.msra.mxu0 0.0
        %972 = vmatpush.msra.mxu0 0.0
        %973 = vmatpush.msra.mxu0 0.0
        %974 = vmatpush.msra.mxu0 0.0
        %975 = vmatpush.msra.mxu0 %v958
        %976 = vmatpush.msra.mxu0 %v957
        %977 = vmatpush.msra.mxu0 %v956
        %978 = vmatpush.msra.mxu0 %v955
        %979 = vmatmul.f32.gmra.mxu0 %v961
        %v980 = vpop.f32.mrf.mxu0
        %v981 = vadd.f32 %v959, %v980
        %982 = vdwg.mxu0
        %v983 = vmax.f32 %v981, 0.0
        %v984 = vld [vmem:[%s10] sm:$0xff]
        %v985 = vld [vmem:[%s10 + $0x8] sm:$0xff]
        %v986 = vld [vmem:[%s10 + $0x10] sm:$0xff]
        %v987 = vld [vmem:[%s10 + $0x18] sm:$0xff]
        %v988 = vld [vmem:[%s10 + $0x20] sm:$0xff]
        %v989 = vld [vmem:[%s10 + $0x28] sm:$0xff]
        %v990 = vld [vmem:[%s10 + $0x30] sm:$0xff]
        %v991 = vld [vmem:[%s10 + $0x38] sm:$0xff]
        %v992 = vperm.slane %v427, 2
        %v994 = vsel %vm488, %v983, 0
        %996 = vmatpush.msra.mxu0 0.0
        %997 = vmatpush.msra.mxu0 0.0
        %998 = vmatpush.msra.mxu0 0.0
        %999 = vmatpush.msra.mxu0 0.0
        %1000 = vmatpush.msra.mxu0 0.0
        %1001 = vmatpush.msra.mxu0 0.0
        %1002 = vmatpush.msra.mxu0 0.0
        %1003 = vmatpush.msra.mxu0 0.0
        %1004 = vmatpush.msra.mxu0 %v991
        %1005 = vmatpush.msra.mxu0 %v990
        %1006 = vmatpush.msra.mxu0 %v989
        %1007 = vmatpush.msra.mxu0 %v988
        %1008 = vmatpush.msra.mxu0 %v987
        %1009 = vmatpush.msra.mxu0 %v986
        %1010 = vmatpush.msra.mxu0 %v985
        %1011 = vmatpush.msra.mxu0 %v984
        %1012 = vmatmul.f32.gmra.mxu0 %v994
        %v1013 = vpop.f32.mrf.mxu0
        %v1014 = vadd.f32 %v992, %v1013
        %1015 = vdwg.mxu0
        %v1016 = vadd.f32 %v954, %v1014
        %v1017 = vsel %vm453, %v1016, 0.0
        %1018 = vadd.xlane.f32.xlu0 %v1017
        %v1019 = vpop.xlane.xlu0 %1018
        %v1020 = vmul.f32 %v1019, %v673
        %v1021 = vsub.f32 %v1016, %v1020
        %v1022 = vmul.f32 %v1021, %v1021
        %v1023 = vsel %vm453, %v1022, 0.0
        %1024 = vadd.xlane.f32.xlu0 %v1023
        %v1025 = vpop.xlane.xlu0 %1024
        %v1026 = vmul.f32 %v1025, %v673
        %v1027 = vadd.f32 %v1026, 1e-05
        %v1028 = vrsqrt.pop %v1027
        %v1029 = vmul.f32 %v1028, %v1027
        %v1030 = vmul.f32 %v1029, %v1028
        %v1031 = vmul.f32 0.5, %v1030
        %v1032 = vsub.f32 1.5, %v1031
        %v1033 = vmul.f32 %v1028, %v1032
        %vm1034 = vweird.f32 %v1027
        %vm1035 = vweird.f32 %v1028
        %vm1036 = vmor %vm1034, %vm1035
        %v1037 = vsel %vm1036, %v1028, %v1033
        %v1038 = vmul.f32 %v1021, %v1037
        %v1039 = vperm.slane %v427, 7
        %v1040 = vmul.f32 %v1038, %v1039
        %v1041 = vperm.slane %v428, 0
        %v1042 = vadd.f32 %v1040, %v1041
        %1043 = vst.msk [vmem:[%s417] sm:$0xff] %vm453, %v1042
        %s1044 = sand.u32 %s296, 1
        %s1045 = scalar_lea.sflag [#allocation3], %s1044
        %s1046 = sand.u32 %s296, 1
        %s1047 = smul.addr %s1046, 8
        %s1048 = scalar_lea.vmem [#allocation2], %s1047
        // Predicated region
        $region69: #{tpu_custom_call.1} parent=67 // pred_check
          %p1049 = pneg %p306
        $region70: #{tpu_custom_call.1} parent=67 // pred_check_branch
          %1051 = sbr.rel (%p1049) target = $region72
        $region71: #{tpu_custom_call.1} parent=67 // pred_region
          %1053 = vsyncadd %s1045, 0
          %s1054 = smul.addr %s26, 8
          %s1055 = scalar_lea.hbm %s12, %s1054
          %s1057 = sshll.u32 %s1048, 4
          %s1058 = int_to_ptr.vmem [resolvable:$true] %s1057
          %s1059 = sshll.u32 %s1055, 4
          %s1060 = int_to_ptr.hbm [resolvable:$true] %s1059
          %1062 = dma.vmem_to_hbm [thread:$0]  %s1058, 128, %s1060, %s1045
        $region72: #{tpu_custom_call.1} parent=67 // pred_fallthru
          _
      $region68: #{tpu_custom_call.1} parent=5 // pred_fallthru
        _
      %p1063 = scmp.le.s32.totalorder 2, %s21
      // Predicated region
      $region73: #{tpu_custom_call.1} parent=5 // pred_check
        %p1064 = pneg %p1063
      $region74: #{tpu_custom_call.1} parent=5 // pred_check_branch
        %1066 = sbr.rel (%p1064) target = $region76
      $region75: #{tpu_custom_call.1} parent=5 // pred_region
        %s1067 = ssub.s32 %s21, 2
        // Predicated region
        $region77: #{tpu_custom_call.1} parent=75 // pred_check
          %p1068 = pneg %p312
        $region78: #{tpu_custom_call.1} parent=75 // pred_check_branch
          %1070 = sbr.rel (%p1068) target = $region80
        $region79: #{tpu_custom_call.1} parent=75 // pred_region
          %s1071 = sand.u32 %s297, 1
          %s1072 = scalar_lea.sflag [#allocation3], %s1071
          %s1073 = sand.u32 %s297, 1
          %s1074 = smul.addr %s1073, 8
          %s1075 = scalar_lea.vmem [#allocation2], %s1074
          %1077 = dma.done %s1072, 128
        $region80: #{tpu_custom_call.1} parent=75 // pred_fallthru
          _
      $region76: #{tpu_custom_call.1} parent=5 // pred_fallthru
        _
    $region6: #{tpu_custom_call.1} parent=1 // loop_footer
      %s25 = sadd.s32 1, %s21
    $region7: #{tpu_custom_call.1} parent=1 // loop_footer_branch
      %20 = sbr.rel target = $region3
    $region8: #{tpu_custom_call.1} parent=1 // loop_exit
      _
    %1078 = vsyncpa [#allocation3], 1
    %s1079 = scalar_lea.sflag [#allocation3], 1
    %1080 = vsyncpa %s1079, 1

</llo_original>
